<compile_context>
chip_gen: v7x
topology: tpu7x:2x2x1
jax: 0.10.0
libtpu: 0.0.40
codegen_flags: <defaults>
</compile_context>

<pallas_src>
import functools

import jax
import jax.numpy as jnp
from jax.experimental import pallas as pl
from jax.experimental.pallas import tpu as pltpu


# ----------------------------------------------------------------------------
# Banded-weight construction (wrapper side, plain XLA, tiny).
#
# For a same-padded KxK conv on an NHWC activation, fold (W, C) onto the lane
# axis and absorb the horizontal (W-direction) taps + boundary into a banded
# matrix so that each vertical tap ky becomes one dense matmul:
#
#   y_fold[h, w*Cout + co] = sum_ky  xpadH[h + ky, :] @ band[ky][:, w*Cout+co]
#
# band[ky][u*Cin + ci, w*Cout + co] = W_oihw[co, ci, ky, u - w + p]
# (zero when u - w + p is outside [0, K)).
# ----------------------------------------------------------------------------
def fold_conv_weight(w_oihw, img_w):
    cout, cin, K, Kw = w_oihw.shape
    assert K == Kw and K % 2 == 1, "only odd square kernels supported"
    p = K // 2
    w_hwio = jnp.transpose(w_oihw, (2, 3, 1, 0))                # (K, K, Cin, Cout)
    u = jnp.arange(img_w)[:, None]                               # (W, 1)
    w_col = jnp.arange(img_w)[None, :]                           # (1, W)
    kx = u - w_col + p                                           # (W, W)
    valid = (kx >= 0) & (kx < K)
    kx_c = jnp.clip(kx, 0, K - 1)
    g = w_hwio[:, kx_c]                                          # (K, W, W, Cin, Cout)
    g = jnp.where(valid[None, :, :, None, None], g, 0.0)
    band = jnp.transpose(g, (0, 1, 3, 2, 4))                     # (K, W, Cin, W, Cout)
    return band.reshape(K, img_w * cin, img_w * cout)            # (K, W*Cin, W*Cout)


# ----------------------------------------------------------------------------
# Fused Pallas kernel: three chained (residual + same-padded conv) stages.
# ----------------------------------------------------------------------------
def _orsnet2_kernel(x_ref, bands_ref, y1_ref, y2_ref, y3_ref,
                    xpad_ref, imcol_ref, *, nb, H, WC, K):
    p = K // 2
    Hp = H + 2 * p
    m_ext = nb * Hp - 2 * p

    # Zero only the 2*p border rows (they are never overwritten); place the
    # initial activation (already the concat(x,x) fold) in the centres.
    zrow = jnp.zeros((p, WC), jnp.float32)
    for b in range(nb):
        xpad_ref[b * Hp:b * Hp + p, :] = zrow
        xpad_ref[b * Hp + p + H:(b + 1) * Hp, :] = zrow
        xpad_ref[b * Hp + p:b * Hp + p + H, :] = x_ref[b].astype(jnp.float32)

    def stage(band_bf16, y_ref):
        # im2col copy (f32 -> bf16): the sublane-shifted accesses are confined
        # to this copy step; the MXU-feeding load below is fully aligned.
        for ky in range(K):
            imcol_ref[:, ky * WC:(ky + 1) * WC] = (
                xpad_ref[ky:ky + m_ext, :].astype(jnp.bfloat16))
        # One MXU matmul per stage: (m_ext, K*WC) x (K*WC, WC), f32 accumulate.
        acc = jnp.dot(imcol_ref[...], band_bf16,
                      preferred_element_type=jnp.float32)
        # Residual add in f32 (v5e-safe); keep the activation resident in xpad.
        for b in range(nb):
            newc = (xpad_ref[b * Hp + p:b * Hp + p + H, :]
                    + acc[b * Hp:b * Hp + H, :])
            xpad_ref[b * Hp + p:b * Hp + p + H, :] = newc
            y_ref[b] = newc.astype(y_ref.dtype)

    stage(bands_ref[0], y1_ref)
    stage(bands_ref[1], y2_ref)
    stage(bands_ref[2], y3_ref)


# ----------------------------------------------------------------------------
# ORSNet2 forward (NCHW in / NCHW out, like the PyTorch module)
# ----------------------------------------------------------------------------
def orsnet2_forward(x_nchw, weights_oihw, num_blk=1, batch_tile=None):
    N, nf, H, W = x_nchw.shape
    C = 2 * nf
    WC = W * C
    K = weights_oihw[0].shape[-1]
    assert K % 2 == 1, "even kernel_size changes PyTorch output size; unsupported"
    p = K // 2

    # TODO(synk): FFCResnetBlock is not defined in the reference source; the
    # `num_blk` body blocks are treated as identity pass-throughs.
    del num_blk

    # Default: fold the whole batch into one grid step (best on single-TC
    # v5e/v6e at small sizes).  On v7x (2 TCs) pass batch_tile=N//2 for N>=2.
    if batch_tile is None:
        batch_tile = N
    assert N % batch_tile == 0
    nb = batch_tile
    Hp = H + 2 * p
    m_ext = nb * Hp - 2 * p

    # VMEM guard: banded weights grow as 3*K*(W*C)^2 bytes (bf16 here).
    band_bytes = 3 * K * WC * WC * 2
    assert band_bytes <= 32 * 1024 * 1024, (
        f"banded weights need {band_bytes / 2**20:.1f} MiB VMEM; W-tile the lane "
        "axis (block-banded weights with a (K-1)/2-column halo) before scaling W")
    # TODO(synk): at production W switch to W-tiled block-banded weights (keeps
    # 128-lane density, restores ~direct-conv FLOPs, bounds band VMEM on v7x).

    # concat((x, x), dim=1) -> NHWC -> lane-dense (N, H, W*C) fold.
    x2 = jnp.concatenate([x_nchw, x_nchw], axis=1)
    x2 = jnp.transpose(x2, (0, 2, 3, 1)).reshape(N, H, WC)

    # Three stages' banded weights, flattened per stage to (K*WC, WC), stacked
    # into one bf16 input (single DMA / resident buffer).
    bands = jnp.stack(
        [fold_conv_weight(w, W).reshape(K * WC, WC) for w in weights_oihw]
    ).astype(jnp.bfloat16)                                        # (3, K*WC, WC)

    kern = functools.partial(_orsnet2_kernel, nb=nb, H=H, WC=WC, K=K)
    act_spec = pl.BlockSpec((nb, H, WC), lambda i: (i, 0, 0))
    band_spec = pl.BlockSpec((3, K * WC, WC), lambda i: (0, 0, 0))
    out_sds = jax.ShapeDtypeStruct((N, H, WC), x_nchw.dtype)

    # Advisory cost: direct-conv FLOPs (not the banded formulation's inflated count).
    flops = 3 * 2 * N * H * W * C * C * K * K
    bytes_accessed = (x2.size * x2.dtype.itemsize + bands.size * 2
                      + 3 * N * H * WC * x_nchw.dtype.itemsize)

    y1, y2, y3 = pl.pallas_call(
        kern,
        out_shape=(out_sds, out_sds, out_sds),
        grid=(N // nb,),
        in_specs=[act_spec, band_spec],
        out_specs=(act_spec, act_spec, act_spec),
        scratch_shapes=[pltpu.VMEM((nb * Hp, WC), jnp.float32),
                        pltpu.VMEM((m_ext, K * WC), jnp.bfloat16)],
        compiler_params=pltpu.CompilerParams(dimension_semantics=("parallel",)),
        cost_estimate=pl.CostEstimate(flops=flops, transcendentals=0,
                                      bytes_accessed=bytes_accessed),
    )(x2, bands)

    def unfold(y):  # (N, H, W*C) -> NCHW
        # TODO(synk): if downstream accepts the folded (N, H, W*C) layout, drop
        # this transpose to avoid an extra XLA pass over the outputs.
        return jnp.transpose(y.reshape(N, H, W, C), (0, 3, 1, 2))

    return unfold(y1), unfold(y2), unfold(y3)


# ----------------------------------------------------------------------------
# Pure-JAX reference (for correctness check only)
# ----------------------------------------------------------------------------
def _reference_forward(x_nchw, weights_oihw):
    K = weights_oihw[0].shape[-1]
    p = K // 2
    y = jnp.transpose(jnp.concatenate([x_nchw, x_nchw], axis=1), (0, 2, 3, 1))
    outs = []
    for w in weights_oihw:
        w_hwio = jnp.transpose(w, (2, 3, 1, 0))
        y = y + jax.lax.conv_general_dilated(
            y, w_hwio, window_strides=(1, 1), padding=[(p, p), (p, p)],
            dimension_numbers=("NHWC", "HWIO", "NHWC"))
        outs.append(jnp.transpose(y, (0, 3, 1, 2)))
    return tuple(outs)


if __name__ == "__main__":
    n_feat = 4
    kernel_size = 3
    num_blk = 2
    batch, H, W = 2, 16, 16
    c2 = 2 * n_feat

    key = jax.random.PRNGKey(0)
    kx, k1, k2, k3 = jax.random.split(key, 4)
    x = jax.random.normal(kx, (batch, n_feat, H, W), dtype=jnp.float32)  # NCHW
    weights = tuple(
        jax.random.normal(k, (c2, c2, kernel_size, kernel_size), jnp.float32) * 0.05
        for k in (k1, k2, k3))  # PyTorch OIHW conv weights

    fwd = jax.jit(functools.partial(orsnet2_forward, num_blk=num_blk))
    o1, o2, o3 = fwd(x, weights)
    jax.block_until_ready((o1, o2, o3))

    assert o1.shape == (batch, c2, H, W)
    assert o2.shape == (batch, c2, H, W)
    assert o3.shape == (batch, c2, H, W)

    r1, r2, r3 = jax.jit(_reference_forward)(x, weights)
    for got, ref in ((o1, r1), (o2, r2), (o3, r3)):
        err = float(jnp.max(jnp.abs(got - ref)))
        assert jnp.allclose(got, ref, rtol=2e-2, atol=2e-2), f"max abs err {err}"

    print("KERNEL_OK")
</pallas_src>

<mosaic_0001>
module attributes {stable_mosaic.version = 11 : i64} {
  func.func @_orsnet2_kernel(%arg0: i32, %arg1: memref<2x16x128xf32, #tpu.memory_space<vmem>>, %arg2: memref<3x384x128xbf16, #tpu.memory_space<vmem>>, %arg3: memref<2x16x128xf32, #tpu.memory_space<vmem>>, %arg4: memref<2x16x128xf32, #tpu.memory_space<vmem>>, %arg5: memref<2x16x128xf32, #tpu.memory_space<vmem>>, %arg6: memref<36x128xf32, #tpu.memory_space<vmem>>, %arg7: memref<34x384xbf16, #tpu.memory_space<vmem>>) attributes {dimension_semantics = [#tpu.dimension_semantics<parallel>], iteration_bounds = array<i64: 1>, scalar_prefetch = 0 : i64, scratch_operands = 2 : i64, tpu.core_type = #tpu.core_type<tc>, window_params = [{transform_indices = @transform_0, window_bounds = array<i64: 2, 16, 128>}, {pipeline_mode = #tpu.pipeline_mode<synchronous>, transform_indices = @transform_1, window_bounds = array<i64: 3, 384, 128>}, {transform_indices = @transform_2, window_bounds = array<i64: 2, 16, 128>}, {transform_indices = @transform_3, window_bounds = array<i64: 2, 16, 128>}, {transform_indices = @transform_4, window_bounds = array<i64: 2, 16, 128>}]} {
    %cst = arith.constant 0.000000e+00 : f32
    %0 = vector.broadcast %cst : f32 to vector<1x128xf32>
    %c0 = arith.constant 0 : index
    %c0_0 = arith.constant 0 : index
    %1 = vector.load %arg6[%c0, %c0_0] : memref<36x128xf32, #tpu.memory_space<vmem>>, vector<1x128xf32>
    tpu.vector_store %arg6[%c0, %c0_0], %0 {strides = array<i32>} : memref<36x128xf32, #tpu.memory_space<vmem>>, vector<1x128xf32>,
    %c17 = arith.constant 17 : index
    %c0_1 = arith.constant 0 : index
    %2 = vector.load %arg6[%c17, %c0_1] : memref<36x128xf32, #tpu.memory_space<vmem>>, vector<1x128xf32>
    tpu.vector_store %arg6[%c17, %c0_1], %0 {strides = array<i32>} : memref<36x128xf32, #tpu.memory_space<vmem>>, vector<1x128xf32>,
    %c0_2 = arith.constant 0 : index
    %c0_3 = arith.constant 0 : index
    %c0_4 = arith.constant 0 : index
    %3 = vector.load %arg1[%c0_2, %c0_3, %c0_4] : memref<2x16x128xf32, #tpu.memory_space<vmem>>, vector<1x16x128xf32>
    %4 = vector.shape_cast %3 : vector<1x16x128xf32> to vector<16x128xf32>
    %c1 = arith.constant 1 : index
    %c0_5 = arith.constant 0 : index
    %5 = vector.load %arg6[%c1, %c0_5] : memref<36x128xf32, #tpu.memory_space<vmem>>, vector<16x128xf32>
    tpu.vector_store %arg6[%c1, %c0_5], %4 {strides = array<i32>} : memref<36x128xf32, #tpu.memory_space<vmem>>, vector<16x128xf32>,
    %c18 = arith.constant 18 : index
    %c0_6 = arith.constant 0 : index
    %6 = vector.load %arg6[%c18, %c0_6] : memref<36x128xf32, #tpu.memory_space<vmem>>, vector<1x128xf32>
    tpu.vector_store %arg6[%c18, %c0_6], %0 {strides = array<i32>} : memref<36x128xf32, #tpu.memory_space<vmem>>, vector<1x128xf32>,
    %c35 = arith.constant 35 : index
    %c0_7 = arith.constant 0 : index
    %7 = vector.load %arg6[%c35, %c0_7] : memref<36x128xf32, #tpu.memory_space<vmem>>, vector<1x128xf32>
    tpu.vector_store %arg6[%c35, %c0_7], %0 {strides = array<i32>} : memref<36x128xf32, #tpu.memory_space<vmem>>, vector<1x128xf32>,
    %c1_8 = arith.constant 1 : index
    %c0_9 = arith.constant 0 : index
    %c0_10 = arith.constant 0 : index
    %8 = vector.load %arg1[%c1_8, %c0_9, %c0_10] : memref<2x16x128xf32, #tpu.memory_space<vmem>>, vector<1x16x128xf32>
    %9 = vector.shape_cast %8 : vector<1x16x128xf32> to vector<16x128xf32>
    %c19 = arith.constant 19 : index
    %c0_11 = arith.constant 0 : index
    %10 = vector.load %arg6[%c19, %c0_11] : memref<36x128xf32, #tpu.memory_space<vmem>>, vector<16x128xf32>
    tpu.vector_store %arg6[%c19, %c0_11], %9 {strides = array<i32>} : memref<36x128xf32, #tpu.memory_space<vmem>>, vector<16x128xf32>,
    %c0_12 = arith.constant 0 : index
    %c0_13 = arith.constant 0 : index
    %c0_14 = arith.constant 0 : index
    %11 = vector.load %arg2[%c0_12, %c0_13, %c0_14] : memref<3x384x128xbf16, #tpu.memory_space<vmem>>, vector<1x384x128xbf16>
    %12 = vector.shape_cast %11 : vector<1x384x128xbf16> to vector<384x128xbf16>
    %c0_15 = arith.constant 0 : index
    %c0_16 = arith.constant 0 : index
    %13 = vector.load %arg6[%c0_15, %c0_16] : memref<36x128xf32, #tpu.memory_space<vmem>>, vector<34x128xf32>
    %14 = arith.truncf %13 : vector<34x128xf32> to vector<34x128xbf16>
    %c0_17 = arith.constant 0 : index
    %c0_18 = arith.constant 0 : index
    %15 = vector.load %arg7[%c0_17, %c0_18] : memref<34x384xbf16, #tpu.memory_space<vmem>>, vector<34x128xbf16>
    tpu.vector_store %arg7[%c0_17, %c0_18], %14 {strides = array<i32>} : memref<34x384xbf16, #tpu.memory_space<vmem>>, vector<34x128xbf16>,
    %c1_19 = arith.constant 1 : index
    %c0_20 = arith.constant 0 : index
    %16 = vector.load %arg6[%c1_19, %c0_20] : memref<36x128xf32, #tpu.memory_space<vmem>>, vector<34x128xf32>
    %17 = arith.truncf %16 : vector<34x128xf32> to vector<34x128xbf16>
    %c0_21 = arith.constant 0 : index
    %c128 = arith.constant 128 : index
    %18 = vector.load %arg7[%c0_21, %c128] : memref<34x384xbf16, #tpu.memory_space<vmem>>, vector<34x128xbf16>
    tpu.vector_store %arg7[%c0_21, %c128], %17 {strides = array<i32>} : memref<34x384xbf16, #tpu.memory_space<vmem>>, vector<34x128xbf16>,
    %c2 = arith.constant 2 : index
    %c0_22 = arith.constant 0 : index
    %19 = vector.load %arg6[%c2, %c0_22] : memref<36x128xf32, #tpu.memory_space<vmem>>, vector<34x128xf32>
    %20 = arith.truncf %19 : vector<34x128xf32> to vector<34x128xbf16>
    %c0_23 = arith.constant 0 : index
    %c256 = arith.constant 256 : index
    %21 = vector.load %arg7[%c0_23, %c256] : memref<34x384xbf16, #tpu.memory_space<vmem>>, vector<34x128xbf16>
    tpu.vector_store %arg7[%c0_23, %c256], %20 {strides = array<i32>} : memref<34x384xbf16, #tpu.memory_space<vmem>>, vector<34x128xbf16>,
    %c0_24 = arith.constant 0 : index
    %c0_25 = arith.constant 0 : index
    %22 = vector.load %arg7[%c0_24, %c0_25] : memref<34x384xbf16, #tpu.memory_space<vmem>>, vector<34x384xbf16>
    %cst_26 = arith.constant dense<0.000000e+00> : vector<34x128xf32>
    %23 = tpu.matmul %22, %12, %cst_26 {dimension_numbers = #tpu.dot_dimension_numbers<[1], [0], [0], [1], [0, 0, 1, 1], [], []>} : vector<34x384xbf16>, vector<384x128xbf16>, vector<34x128xf32> -> vector<34x128xf32>
    %c1_27 = arith.constant 1 : index
    %c0_28 = arith.constant 0 : index
    %24 = vector.load %arg6[%c1_27, %c0_28] : memref<36x128xf32, #tpu.memory_space<vmem>>, vector<16x128xf32>
    %25 = vector.extract_strided_slice %23 {offsets = [0, 0], sizes = [16, 128], strides = [1, 1]} : vector<34x128xf32> to vector<16x128xf32>
    %26 = arith.addf %24, %25 : vector<16x128xf32>
    %c1_29 = arith.constant 1 : index
    %c0_30 = arith.constant 0 : index
    %27 = vector.load %arg6[%c1_29, %c0_30] : memref<36x128xf32, #tpu.memory_space<vmem>>, vector<16x128xf32>
    tpu.vector_store %arg6[%c1_29, %c0_30], %26 {strides = array<i32>} : memref<36x128xf32, #tpu.memory_space<vmem>>, vector<16x128xf32>,
    %c0_31 = arith.constant 0 : index
    %c0_32 = arith.constant 0 : index
    %c0_33 = arith.constant 0 : index
    %28 = vector.load %arg3[%c0_31, %c0_32, %c0_33] : memref<2x16x128xf32, #tpu.memory_space<vmem>>, vector<1x16x128xf32>
    %29 = vector.shape_cast %28 : vector<1x16x128xf32> to vector<16x128xf32>
    %30 = vector.shape_cast %26 : vector<16x128xf32> to vector<1x16x128xf32>
    tpu.vector_store %arg3[%c0_31, %c0_32, %c0_33], %30 {strides = array<i32>} : memref<2x16x128xf32, #tpu.memory_space<vmem>>, vector<1x16x128xf32>,
    %c19_34 = arith.constant 19 : index
    %c0_35 = arith.constant 0 : index
    %31 = vector.load %arg6[%c19_34, %c0_35] : memref<36x128xf32, #tpu.memory_space<vmem>>, vector<16x128xf32>
    %32 = vector.extract_strided_slice %23 {offsets = [18, 0], sizes = [16, 128], strides = [1, 1]} : vector<34x128xf32> to vector<16x128xf32>
    %33 = arith.addf %31, %32 : vector<16x128xf32>
    %c19_36 = arith.constant 19 : index
    %c0_37 = arith.constant 0 : index
    %34 = vector.load %arg6[%c19_36, %c0_37] : memref<36x128xf32, #tpu.memory_space<vmem>>, vector<16x128xf32>
    tpu.vector_store %arg6[%c19_36, %c0_37], %33 {strides = array<i32>} : memref<36x128xf32, #tpu.memory_space<vmem>>, vector<16x128xf32>,
    %c1_38 = arith.constant 1 : index
    %c0_39 = arith.constant 0 : index
    %c0_40 = arith.constant 0 : index
    %35 = vector.load %arg3[%c1_38, %c0_39, %c0_40] : memref<2x16x128xf32, #tpu.memory_space<vmem>>, vector<1x16x128xf32>
    %36 = vector.shape_cast %35 : vector<1x16x128xf32> to vector<16x128xf32>
    %37 = vector.shape_cast %33 : vector<16x128xf32> to vector<1x16x128xf32>
    tpu.vector_store %arg3[%c1_38, %c0_39, %c0_40], %37 {strides = array<i32>} : memref<2x16x128xf32, #tpu.memory_space<vmem>>, vector<1x16x128xf32>,
    %c1_41 = arith.constant 1 : index
    %c0_42 = arith.constant 0 : index
    %c0_43 = arith.constant 0 : index
    %38 = vector.load %arg2[%c1_41, %c0_42, %c0_43] : memref<3x384x128xbf16, #tpu.memory_space<vmem>>, vector<1x384x128xbf16>
    %39 = vector.shape_cast %38 : vector<1x384x128xbf16> to vector<384x128xbf16>
    %c0_44 = arith.constant 0 : index
    %c0_45 = arith.constant 0 : index
    %40 = vector.load %arg6[%c0_44, %c0_45] : memref<36x128xf32, #tpu.memory_space<vmem>>, vector<34x128xf32>
    %41 = arith.truncf %40 : vector<34x128xf32> to vector<34x128xbf16>
    %c0_46 = arith.constant 0 : index
    %c0_47 = arith.constant 0 : index
    %42 = vector.load %arg7[%c0_46, %c0_47] : memref<34x384xbf16, #tpu.memory_space<vmem>>, vector<34x128xbf16>
    tpu.vector_store %arg7[%c0_46, %c0_47], %41 {strides = array<i32>} : memref<34x384xbf16, #tpu.memory_space<vmem>>, vector<34x128xbf16>,
    %c1_48 = arith.constant 1 : index
    %c0_49 = arith.constant 0 : index
    %43 = vector.load %arg6[%c1_48, %c0_49] : memref<36x128xf32, #tpu.memory_space<vmem>>, vector<34x128xf32>
    %44 = arith.truncf %43 : vector<34x128xf32> to vector<34x128xbf16>
    %c0_50 = arith.constant 0 : index
    %c128_51 = arith.constant 128 : index
    %45 = vector.load %arg7[%c0_50, %c128_51] : memref<34x384xbf16, #tpu.memory_space<vmem>>, vector<34x128xbf16>
    tpu.vector_store %arg7[%c0_50, %c128_51], %44 {strides = array<i32>} : memref<34x384xbf16, #tpu.memory_space<vmem>>, vector<34x128xbf16>,
    %c2_52 = arith.constant 2 : index
    %c0_53 = arith.constant 0 : index
    %46 = vector.load %arg6[%c2_52, %c0_53] : memref<36x128xf32, #tpu.memory_space<vmem>>, vector<34x128xf32>
    %47 = arith.truncf %46 : vector<34x128xf32> to vector<34x128xbf16>
    %c0_54 = arith.constant 0 : index
    %c256_55 = arith.constant 256 : index
    %48 = vector.load %arg7[%c0_54, %c256_55] : memref<34x384xbf16, #tpu.memory_space<vmem>>, vector<34x128xbf16>
    tpu.vector_store %arg7[%c0_54, %c256_55], %47 {strides = array<i32>} : memref<34x384xbf16, #tpu.memory_space<vmem>>, vector<34x128xbf16>,
    %c0_56 = arith.constant 0 : index
    %c0_57 = arith.constant 0 : index
    %49 = vector.load %arg7[%c0_56, %c0_57] : memref<34x384xbf16, #tpu.memory_space<vmem>>, vector<34x384xbf16>
    %cst_58 = arith.constant dense<0.000000e+00> : vector<34x128xf32>
    %50 = tpu.matmul %49, %39, %cst_58 {dimension_numbers = #tpu.dot_dimension_numbers<[1], [0], [0], [1], [0, 0, 1, 1], [], []>} : vector<34x384xbf16>, vector<384x128xbf16>, vector<34x128xf32> -> vector<34x128xf32>
    %c1_59 = arith.constant 1 : index
    %c0_60 = arith.constant 0 : index
    %51 = vector.load %arg6[%c1_59, %c0_60] : memref<36x128xf32, #tpu.memory_space<vmem>>, vector<16x128xf32>
    %52 = vector.extract_strided_slice %50 {offsets = [0, 0], sizes = [16, 128], strides = [1, 1]} : vector<34x128xf32> to vector<16x128xf32>
    %53 = arith.addf %51, %52 : vector<16x128xf32>
    %c1_61 = arith.constant 1 : index
    %c0_62 = arith.constant 0 : index
    %54 = vector.load %arg6[%c1_61, %c0_62] : memref<36x128xf32, #tpu.memory_space<vmem>>, vector<16x128xf32>
    tpu.vector_store %arg6[%c1_61, %c0_62], %53 {strides = array<i32>} : memref<36x128xf32, #tpu.memory_space<vmem>>, vector<16x128xf32>,
    %c0_63 = arith.constant 0 : index
    %c0_64 = arith.constant 0 : index
    %c0_65 = arith.constant 0 : index
    %55 = vector.load %arg4[%c0_63, %c0_64, %c0_65] : memref<2x16x128xf32, #tpu.memory_space<vmem>>, vector<1x16x128xf32>
    %56 = vector.shape_cast %55 : vector<1x16x128xf32> to vector<16x128xf32>
    %57 = vector.shape_cast %53 : vector<16x128xf32> to vector<1x16x128xf32>
    tpu.vector_store %arg4[%c0_63, %c0_64, %c0_65], %57 {strides = array<i32>} : memref<2x16x128xf32, #tpu.memory_space<vmem>>, vector<1x16x128xf32>,
    %c19_66 = arith.constant 19 : index
    %c0_67 = arith.constant 0 : index
    %58 = vector.load %arg6[%c19_66, %c0_67] : memref<36x128xf32, #tpu.memory_space<vmem>>, vector<16x128xf32>
    %59 = vector.extract_strided_slice %50 {offsets = [18, 0], sizes = [16, 128], strides = [1, 1]} : vector<34x128xf32> to vector<16x128xf32>
    %60 = arith.addf %58, %59 : vector<16x128xf32>
    %c19_68 = arith.constant 19 : index
    %c0_69 = arith.constant 0 : index
    %61 = vector.load %arg6[%c19_68, %c0_69] : memref<36x128xf32, #tpu.memory_space<vmem>>, vector<16x128xf32>
    tpu.vector_store %arg6[%c19_68, %c0_69], %60 {strides = array<i32>} : memref<36x128xf32, #tpu.memory_space<vmem>>, vector<16x128xf32>,
    %c1_70 = arith.constant 1 : index
    %c0_71 = arith.constant 0 : index
    %c0_72 = arith.constant 0 : index
    %62 = vector.load %arg4[%c1_70, %c0_71, %c0_72] : memref<2x16x128xf32, #tpu.memory_space<vmem>>, vector<1x16x128xf32>
    %63 = vector.shape_cast %62 : vector<1x16x128xf32> to vector<16x128xf32>
    %64 = vector.shape_cast %60 : vector<16x128xf32> to vector<1x16x128xf32>
    tpu.vector_store %arg4[%c1_70, %c0_71, %c0_72], %64 {strides = array<i32>} : memref<2x16x128xf32, #tpu.memory_space<vmem>>, vector<1x16x128xf32>,
    %c2_73 = arith.constant 2 : index
    %c0_74 = arith.constant 0 : index
    %c0_75 = arith.constant 0 : index
    %65 = vector.load %arg2[%c2_73, %c0_74, %c0_75] : memref<3x384x128xbf16, #tpu.memory_space<vmem>>, vector<1x384x128xbf16>
    %66 = vector.shape_cast %65 : vector<1x384x128xbf16> to vector<384x128xbf16>
    %c0_76 = arith.constant 0 : index
    %c0_77 = arith.constant 0 : index
    %67 = vector.load %arg6[%c0_76, %c0_77] : memref<36x128xf32, #tpu.memory_space<vmem>>, vector<34x128xf32>
    %68 = arith.truncf %67 : vector<34x128xf32> to vector<34x128xbf16>
    %c0_78 = arith.constant 0 : index
    %c0_79 = arith.constant 0 : index
    %69 = vector.load %arg7[%c0_78, %c0_79] : memref<34x384xbf16, #tpu.memory_space<vmem>>, vector<34x128xbf16>
    tpu.vector_store %arg7[%c0_78, %c0_79], %68 {strides = array<i32>} : memref<34x384xbf16, #tpu.memory_space<vmem>>, vector<34x128xbf16>,
    %c1_80 = arith.constant 1 : index
    %c0_81 = arith.constant 0 : index
    %70 = vector.load %arg6[%c1_80, %c0_81] : memref<36x128xf32, #tpu.memory_space<vmem>>, vector<34x128xf32>
    %71 = arith.truncf %70 : vector<34x128xf32> to vector<34x128xbf16>
    %c0_82 = arith.constant 0 : index
    %c128_83 = arith.constant 128 : index
    %72 = vector.load %arg7[%c0_82, %c128_83] : memref<34x384xbf16, #tpu.memory_space<vmem>>, vector<34x128xbf16>
    tpu.vector_store %arg7[%c0_82, %c128_83], %71 {strides = array<i32>} : memref<34x384xbf16, #tpu.memory_space<vmem>>, vector<34x128xbf16>,
    %c2_84 = arith.constant 2 : index
    %c0_85 = arith.constant 0 : index
    %73 = vector.load %arg6[%c2_84, %c0_85] : memref<36x128xf32, #tpu.memory_space<vmem>>, vector<34x128xf32>
    %74 = arith.truncf %73 : vector<34x128xf32> to vector<34x128xbf16>
    %c0_86 = arith.constant 0 : index
    %c256_87 = arith.constant 256 : index
    %75 = vector.load %arg7[%c0_86, %c256_87] : memref<34x384xbf16, #tpu.memory_space<vmem>>, vector<34x128xbf16>
    tpu.vector_store %arg7[%c0_86, %c256_87], %74 {strides = array<i32>} : memref<34x384xbf16, #tpu.memory_space<vmem>>, vector<34x128xbf16>,
    %c0_88 = arith.constant 0 : index
    %c0_89 = arith.constant 0 : index
    %76 = vector.load %arg7[%c0_88, %c0_89] : memref<34x384xbf16, #tpu.memory_space<vmem>>, vector<34x384xbf16>
    %cst_90 = arith.constant dense<0.000000e+00> : vector<34x128xf32>
    %77 = tpu.matmul %76, %66, %cst_90 {dimension_numbers = #tpu.dot_dimension_numbers<[1], [0], [0], [1], [0, 0, 1, 1], [], []>} : vector<34x384xbf16>, vector<384x128xbf16>, vector<34x128xf32> -> vector<34x128xf32>
    %c1_91 = arith.constant 1 : index
    %c0_92 = arith.constant 0 : index
    %78 = vector.load %arg6[%c1_91, %c0_92] : memref<36x128xf32, #tpu.memory_space<vmem>>, vector<16x128xf32>
    %79 = vector.extract_strided_slice %77 {offsets = [0, 0], sizes = [16, 128], strides = [1, 1]} : vector<34x128xf32> to vector<16x128xf32>
    %80 = arith.addf %78, %79 : vector<16x128xf32>
    %c1_93 = arith.constant 1 : index
    %c0_94 = arith.constant 0 : index
    %81 = vector.load %arg6[%c1_93, %c0_94] : memref<36x128xf32, #tpu.memory_space<vmem>>, vector<16x128xf32>
    tpu.vector_store %arg6[%c1_93, %c0_94], %80 {strides = array<i32>} : memref<36x128xf32, #tpu.memory_space<vmem>>, vector<16x128xf32>,
    %c0_95 = arith.constant 0 : index
    %c0_96 = arith.constant 0 : index
    %c0_97 = arith.constant 0 : index
    %82 = vector.load %arg5[%c0_95, %c0_96, %c0_97] : memref<2x16x128xf32, #tpu.memory_space<vmem>>, vector<1x16x128xf32>
    %83 = vector.shape_cast %82 : vector<1x16x128xf32> to vector<16x128xf32>
    %84 = vector.shape_cast %80 : vector<16x128xf32> to vector<1x16x128xf32>
    tpu.vector_store %arg5[%c0_95, %c0_96, %c0_97], %84 {strides = array<i32>} : memref<2x16x128xf32, #tpu.memory_space<vmem>>, vector<1x16x128xf32>,
    %c19_98 = arith.constant 19 : index
    %c0_99 = arith.constant 0 : index
    %85 = vector.load %arg6[%c19_98, %c0_99] : memref<36x128xf32, #tpu.memory_space<vmem>>, vector<16x128xf32>
    %86 = vector.extract_strided_slice %77 {offsets = [18, 0], sizes = [16, 128], strides = [1, 1]} : vector<34x128xf32> to vector<16x128xf32>
    %87 = arith.addf %85, %86 : vector<16x128xf32>
    %c19_100 = arith.constant 19 : index
    %c0_101 = arith.constant 0 : index
    %88 = vector.load %arg6[%c19_100, %c0_101] : memref<36x128xf32, #tpu.memory_space<vmem>>, vector<16x128xf32>
    tpu.vector_store %arg6[%c19_100, %c0_101], %87 {strides = array<i32>} : memref<36x128xf32, #tpu.memory_space<vmem>>, vector<16x128xf32>,
    %c1_102 = arith.constant 1 : index
    %c0_103 = arith.constant 0 : index
    %c0_104 = arith.constant 0 : index
    %89 = vector.load %arg5[%c1_102, %c0_103, %c0_104] : memref<2x16x128xf32, #tpu.memory_space<vmem>>, vector<1x16x128xf32>
    %90 = vector.shape_cast %89 : vector<1x16x128xf32> to vector<16x128xf32>
    %91 = vector.shape_cast %87 : vector<16x128xf32> to vector<1x16x128xf32>
    tpu.vector_store %arg5[%c1_102, %c0_103, %c0_104], %91 {strides = array<i32>} : memref<2x16x128xf32, #tpu.memory_space<vmem>>, vector<1x16x128xf32>,
    return
  }
  func.func @transform_0(%arg0: i32) -> (i32, i32, i32) {
    %c0_i32 = arith.constant 0 : i32
    %c0_i32_0 = arith.constant 0 : i32
    %c0_i32_1 = arith.constant 0 : i32
    return %arg0, %c0_i32, %c0_i32_0 : i32, i32, i32
  }
  func.func @transform_1(%arg0: i32) -> (i32, i32, i32) {
    %c0_i32 = arith.constant 0 : i32
    %c0_i32_0 = arith.constant 0 : i32
    %c0_i32_1 = arith.constant 0 : i32
    %c0_i32_2 = arith.constant 0 : i32
    return %c0_i32, %c0_i32_0, %c0_i32_1 : i32, i32, i32
  }
  func.func @transform_2(%arg0: i32) -> (i32, i32, i32) {
    %c0_i32 = arith.constant 0 : i32
    %c0_i32_0 = arith.constant 0 : i32
    %c0_i32_1 = arith.constant 0 : i32
    return %arg0, %c0_i32, %c0_i32_0 : i32, i32, i32
  }
  func.func @transform_3(%arg0: i32) -> (i32, i32, i32) {
    %c0_i32 = arith.constant 0 : i32
    %c0_i32_0 = arith.constant 0 : i32
    %c0_i32_1 = arith.constant 0 : i32
    return %arg0, %c0_i32, %c0_i32_0 : i32, i32, i32
  }
  func.func @transform_4(%arg0: i32) -> (i32, i32, i32) {
    %c0_i32 = arith.constant 0 : i32
    %c0_i32_0 = arith.constant 0 : i32
    %c0_i32_1 = arith.constant 0 : i32
    return %arg0, %c0_i32, %c0_i32_0 : i32, i32, i32
  }
}

</mosaic_0001>

<llo_original>
// kernel: orsnet2_forward.1
$region0: #{orsnet2_forward.1}
  #allocation0 [shape = 'u32[]', space=smem, size = 0x4, offset = 0x4, fixed_abs, tag = 'smem constant byte address 0x4 - core index']
  #allocation1 [shape = 'u32[144,128]{1,0:T(1,128)}', space=vmem, size = 0x12000, scoped, tag = 'internal scratch']
  #allocation2 [shape = 'f32[36,128]{1,0:T(8,128)}', space=vmem, size = 0x5000, scoped, tag = 'scratch operand']
  #allocation3 [shape = 'bf16[34,384]{1,0:T(8,128)(2,1)}', space=vmem, size = 0x7800, scoped, tag = 'scratch operand']
  %s0 = inlined_call_operand.vmem [shape: f32[2,16,128], index: 0, kind: input, shape index: {}]
  %s1 = inlined_call_operand.vmem [shape: bf16[3,384,128], index: 1, kind: input, shape index: {}]
  %s2 = inlined_call_operand.vmem [shape: f32[2,16,128], index: 2, kind: output, shape index: {0}]
  %s3 = inlined_call_operand.vmem [shape: f32[2,16,128], index: 3, kind: output, shape index: {1}]
  %s4 = inlined_call_operand.vmem [shape: f32[2,16,128], index: 4, kind: output, shape index: {2}]
  %5 = xla_tuple %s2, %s3, %s4
  %s6 = sld [smem:[#allocation0]]
  $region34: #{orsnet2_forward.1} parent=0
    _
  %s8 = ssub.s32 1, %s6
  %s9 = scalar_select 0, %s8, %s6
  // Predicated region
  $region2: #{orsnet2_forward.1} parent=0 // pred_check
    _
  $region3: #{orsnet2_forward.1} parent=0 // pred_check_branch
    %11 = sbr.rel (0) target = $region5
  $region4: #{orsnet2_forward.1} parent=0 // pred_region
    _
  $region5: #{orsnet2_forward.1} parent=0 // pred_fallthru
    _
  // Predicated region
  $region6: #{orsnet2_forward.1} parent=0 // pred_check
    _
  $region7: #{orsnet2_forward.1} parent=0 // pred_check_branch
    %13 = sbr.rel (0) target = $region9
  $region8: #{orsnet2_forward.1} parent=0 // pred_region
    _
  $region9: #{orsnet2_forward.1} parent=0 // pred_fallthru
    _
  %15 = vst [vmem:[#allocation2] sm:$0x1] 0.0
  %16 = vst [vmem:[#allocation2 + $0x11] sm:$0x1] 0.0
  %v17 = vld [vmem:[%s0] sm:$0xff]
  %v18 = vld [vmem:[%s0 + $0x8] sm:$0xff]
  %19 = vst [vmem:[#allocation2 + $0x1] sm:$0xff] %v17
  %20 = vst [vmem:[#allocation2 + $0x9] sm:$0xff] %v18
  %21 = vst [vmem:[#allocation2 + $0x12] sm:$0x1] 0.0
  %22 = vst [vmem:[#allocation2 + $0x23] sm:$0x1] 0.0
  %s23 = scalar_lea.vmem %s0, 16
  %v24 = vld [vmem:[%s23] sm:$0xff]
  %v25 = vld [vmem:[%s23 + $0x8] sm:$0xff]
  %26 = vst [vmem:[#allocation2 + $0x13] sm:$0xff] %v24
  %27 = vst [vmem:[#allocation2 + $0x1b] sm:$0xff] %v25
  %v28 = vld [vmem:[%s1] sm:$0xf]
  %v29 = vld [vmem:[%s1 + $0x4] sm:$0xf]
  %v30 = vld [vmem:[%s1 + $0x8] sm:$0xf]
  %v31 = vld [vmem:[%s1 + $0xc] sm:$0xf]
  %v32 = vld [vmem:[%s1 + $0x10] sm:$0xf]
  %v33 = vld [vmem:[%s1 + $0x14] sm:$0xf]
  %v34 = vld [vmem:[%s1 + $0x18] sm:$0xf]
  %v35 = vld [vmem:[%s1 + $0x1c] sm:$0xf]
  %v36 = vld [vmem:[%s1 + $0x20] sm:$0xf]
  %v37 = vld [vmem:[%s1 + $0x24] sm:$0xf]
  %v38 = vld [vmem:[%s1 + $0x28] sm:$0xf]
  %v39 = vld [vmem:[%s1 + $0x2c] sm:$0xf]
  %v40 = vld [vmem:[%s1 + $0x30] sm:$0xf]
  %v41 = vld [vmem:[%s1 + $0x34] sm:$0xf]
  %v42 = vld [vmem:[%s1 + $0x38] sm:$0xf]
  %v43 = vld [vmem:[%s1 + $0x3c] sm:$0xf]
  %v44 = vld [vmem:[%s1 + $0x40] sm:$0xf]
  %v45 = vld [vmem:[%s1 + $0x44] sm:$0xf]
  %v46 = vld [vmem:[%s1 + $0x48] sm:$0xf]
  %v47 = vld [vmem:[%s1 + $0x4c] sm:$0xf]
  %v48 = vld [vmem:[%s1 + $0x50] sm:$0xf]
  %v49 = vld [vmem:[%s1 + $0x54] sm:$0xf]
  %v50 = vld [vmem:[%s1 + $0x58] sm:$0xf]
  %v51 = vld [vmem:[%s1 + $0x5c] sm:$0xf]
  %v52 = vld [vmem:[%s1 + $0x60] sm:$0xf]
  %v53 = vld [vmem:[%s1 + $0x64] sm:$0xf]
  %v54 = vld [vmem:[%s1 + $0x68] sm:$0xf]
  %v55 = vld [vmem:[%s1 + $0x6c] sm:$0xf]
  %v56 = vld [vmem:[%s1 + $0x70] sm:$0xf]
  %v57 = vld [vmem:[%s1 + $0x74] sm:$0xf]
  %v58 = vld [vmem:[%s1 + $0x78] sm:$0xf]
  %v59 = vld [vmem:[%s1 + $0x7c] sm:$0xf]
  %v60 = vld [vmem:[%s1 + $0x80] sm:$0xf]
  %v61 = vld [vmem:[%s1 + $0x84] sm:$0xf]
  %v62 = vld [vmem:[%s1 + $0x88] sm:$0xf]
  %v63 = vld [vmem:[%s1 + $0x8c] sm:$0xf]
  %v64 = vld [vmem:[%s1 + $0x90] sm:$0xf]
  %v65 = vld [vmem:[%s1 + $0x94] sm:$0xf]
  %v66 = vld [vmem:[%s1 + $0x98] sm:$0xf]
  %v67 = vld [vmem:[%s1 + $0x9c] sm:$0xf]
  %v68 = vld [vmem:[%s1 + $0xa0] sm:$0xf]
  %v69 = vld [vmem:[%s1 + $0xa4] sm:$0xf]
  %v70 = vld [vmem:[%s1 + $0xa8] sm:$0xf]
  %v71 = vld [vmem:[%s1 + $0xac] sm:$0xf]
  %v72 = vld [vmem:[%s1 + $0xb0] sm:$0xf]
  %v73 = vld [vmem:[%s1 + $0xb4] sm:$0xf]
  %v74 = vld [vmem:[%s1 + $0xb8] sm:$0xf]
  %v75 = vld [vmem:[%s1 + $0xbc] sm:$0xf]
  %v76 = vld [vmem:[#allocation2] sm:$0xff]
  %v77 = vld [vmem:[#allocation2 + $0x8] sm:$0xff]
  %v78 = vld [vmem:[#allocation2 + $0x10] sm:$0xff]
  %v79 = vld [vmem:[#allocation2 + $0x18] sm:$0xff]
  %v80 = vld [vmem:[#allocation2 + $0x20] sm:$0x3]
  %v81 = vpack.c.bf16 %v77, %v76
  %v82 = vpack.c.bf16 %v79, %v78
  %v83 = vpack.c.bf16 %v80, %v80
  %v87 = vunpack.c.l.b16 %v81
  %v88 = vunpack.c.h.b16 %v81
  %v89 = vunpack.c.l.b16 %v82
  %v90 = vunpack.c.h.b16 %v82
  %v91 = vunpack.c.l.b16 %v83
  %v92 = vpack.c.b16 %v87, %v87
  %v93 = vpack.c.b16 %v88, %v88
  %v94 = vpack.c.b16 %v89, %v89
  %v95 = vpack.c.b16 %v90, %v90
  %v96 = vpack.c.b16 %v91, %v91
  %102 = vst [vmem:[#allocation3] sm:$0xf] %v92
  %103 = vst [vmem:[#allocation3 + $0xc] sm:$0xf] %v93
  %104 = vst [vmem:[#allocation3 + $0x18] sm:$0xf] %v94
  %105 = vst [vmem:[#allocation3 + $0x24] sm:$0xf] %v95
  %106 = vst [vmem:[#allocation3 + $0x30] sm:$0x1] %v96
  %v107 = vld [vmem:[#allocation2 + $0x1] sm:$0xff]
  %v108 = vld [vmem:[#allocation2 + $0x9] sm:$0xff]
  %v109 = vld [vmem:[#allocation2 + $0x11] sm:$0xff]
  %v110 = vld [vmem:[#allocation2 + $0x19] sm:$0xff]
  %v111 = vld [vmem:[#allocation2 + $0x21] sm:$0x3]
  %v112 = vpack.c.bf16 %v108, %v107
  %v113 = vpack.c.bf16 %v110, %v109
  %v114 = vpack.c.bf16 %v111, %v111
  %v118 = vunpack.c.l.b16 %v112
  %v119 = vunpack.c.h.b16 %v112
  %v120 = vunpack.c.l.b16 %v113
  %v121 = vunpack.c.h.b16 %v113
  %v122 = vunpack.c.l.b16 %v114
  %v123 = vpack.c.b16 %v118, %v118
  %v124 = vpack.c.b16 %v119, %v119
  %v125 = vpack.c.b16 %v120, %v120
  %v126 = vpack.c.b16 %v121, %v121
  %v127 = vpack.c.b16 %v122, %v122
  %133 = vst [vmem:[#allocation3 + $0x4] sm:$0xf] %v123
  %134 = vst [vmem:[#allocation3 + $0x10] sm:$0xf] %v124
  %135 = vst [vmem:[#allocation3 + $0x1c] sm:$0xf] %v125
  %136 = vst [vmem:[#allocation3 + $0x28] sm:$0xf] %v126
  %137 = vst [vmem:[#allocation3 + $0x34] sm:$0x1] %v127
  %v138 = vld [vmem:[#allocation2 + $0x2] sm:$0xff]
  %v139 = vld [vmem:[#allocation2 + $0xa] sm:$0xff]
  %v140 = vld [vmem:[#allocation2 + $0x12] sm:$0xff]
  %v141 = vld [vmem:[#allocation2 + $0x1a] sm:$0xff]
  %v142 = vld [vmem:[#allocation2 + $0x22] sm:$0x3]
  %v143 = vpack.c.bf16 %v139, %v138
  %v144 = vpack.c.bf16 %v141, %v140
  %v145 = vpack.c.bf16 %v142, %v142
  %v149 = vunpack.c.l.b16 %v143
  %v150 = vunpack.c.h.b16 %v143
  %v151 = vunpack.c.l.b16 %v144
  %v152 = vunpack.c.h.b16 %v144
  %v153 = vunpack.c.l.b16 %v145
  %v154 = vpack.c.b16 %v149, %v149
  %v155 = vpack.c.b16 %v150, %v150
  %v156 = vpack.c.b16 %v151, %v151
  %v157 = vpack.c.b16 %v152, %v152
  %v158 = vpack.c.b16 %v153, %v153
  %164 = vst [vmem:[#allocation3 + $0x8] sm:$0xf] %v154
  %165 = vst [vmem:[#allocation3 + $0x14] sm:$0xf] %v155
  %166 = vst [vmem:[#allocation3 + $0x20] sm:$0xf] %v156
  %167 = vst [vmem:[#allocation3 + $0x2c] sm:$0xf] %v157
  %168 = vst [vmem:[#allocation3 + $0x38] sm:$0x1] %v158
  %v169 = vld [vmem:[#allocation3] sm:$0xff]
  %v170 = vld [vmem:[#allocation3 + $0x8] sm:$0xf]
  %v171 = vld [vmem:[#allocation3 + $0xc] sm:$0xff]
  %v172 = vld [vmem:[#allocation3 + $0x14] sm:$0xf]
  %v173 = vld [vmem:[#allocation3 + $0x18] sm:$0xff]
  %v174 = vld [vmem:[#allocation3 + $0x20] sm:$0xf]
  %v175 = vld [vmem:[#allocation3 + $0x24] sm:$0xff]
  %v176 = vld [vmem:[#allocation3 + $0x2c] sm:$0xf]
  %v177 = vld [vmem:[#allocation3 + $0x30] sm:$0x11]
  %v178 = vld [vmem:[#allocation3 + $0x38] sm:$0x1]
  %v189 = vunpack.c.l.b16 %v169
  %v190 = vunpack.c.h.b16 %v169
  %v191 = vunpack.c.l.b16 %v170
  %v192 = vunpack.c.l.b16 %v171
  %v193 = vunpack.c.h.b16 %v171
  %v194 = vunpack.c.l.b16 %v172
  %v195 = vunpack.c.l.b16 %v173
  %v196 = vunpack.c.h.b16 %v173
  %v197 = vunpack.c.l.b16 %v174
  %v198 = vunpack.c.l.b16 %v175
  %v199 = vunpack.c.h.b16 %v175
  %v200 = vunpack.c.l.b16 %v176
  %v201 = vunpack.c.l.b16 %v177
  %v202 = vunpack.c.h.b16 %v177
  %v203 = vunpack.c.l.b16 %v178
  %v204 = vpack.c.b16 %v192, %v189
  %v205 = vpack.c.b16 %v193, %v190
  %v206 = vpack.c.b16 %v194, %v191
  %v207 = vpack.c.b16 %v198, %v195
  %v208 = vpack.c.b16 %v199, %v196
  %v209 = vpack.c.b16 %v200, %v197
  %v210 = vpack.c.b16 %v201, %v201
  %v211 = vpack.c.b16 %v202, %v202
  %v212 = vpack.c.b16 %v203, %v203
  %v270 = vunpack.c.l.b16 %v28
  %v271 = vunpack.c.l.b16 %v29
  %v272 = vunpack.c.l.b16 %v30
  %v273 = vunpack.c.l.b16 %v31
  %v274 = vunpack.c.l.b16 %v32
  %v275 = vunpack.c.l.b16 %v33
  %v276 = vunpack.c.l.b16 %v34
  %v277 = vunpack.c.l.b16 %v35
  %v278 = vunpack.c.l.b16 %v36
  %v279 = vunpack.c.l.b16 %v37
  %v280 = vunpack.c.l.b16 %v38
  %v281 = vunpack.c.l.b16 %v39
  %v282 = vunpack.c.l.b16 %v40
  %v283 = vunpack.c.l.b16 %v41
  %v284 = vunpack.c.l.b16 %v42
  %v285 = vunpack.c.l.b16 %v43
  %v286 = vunpack.c.l.b16 %v44
  %v287 = vunpack.c.l.b16 %v45
  %v288 = vunpack.c.l.b16 %v46
  %v289 = vunpack.c.l.b16 %v47
  %v290 = vunpack.c.l.b16 %v48
  %v291 = vunpack.c.l.b16 %v49
  %v292 = vunpack.c.l.b16 %v50
  %v293 = vunpack.c.l.b16 %v51
  %v294 = vunpack.c.l.b16 %v52
  %v295 = vunpack.c.l.b16 %v53
  %v296 = vunpack.c.l.b16 %v54
  %v297 = vunpack.c.l.b16 %v55
  %v298 = vunpack.c.l.b16 %v56
  %v299 = vunpack.c.l.b16 %v57
  %v300 = vunpack.c.l.b16 %v58
  %v301 = vunpack.c.l.b16 %v59
  %v302 = vunpack.c.l.b16 %v60
  %v303 = vunpack.c.l.b16 %v61
  %v304 = vunpack.c.l.b16 %v62
  %v305 = vunpack.c.l.b16 %v63
  %v306 = vunpack.c.l.b16 %v64
  %v307 = vunpack.c.l.b16 %v65
  %v308 = vunpack.c.l.b16 %v66
  %v309 = vunpack.c.l.b16 %v67
  %v310 = vunpack.c.l.b16 %v68
  %v311 = vunpack.c.l.b16 %v69
  %v312 = vunpack.c.l.b16 %v70
  %v313 = vunpack.c.l.b16 %v71
  %v314 = vunpack.c.l.b16 %v72
  %v315 = vunpack.c.l.b16 %v73
  %v316 = vunpack.c.l.b16 %v74
  %v317 = vunpack.c.l.b16 %v75
  %v318 = vpack.c.b16 %v271, %v270
  %v319 = vpack.c.b16 %v273, %v272
  %v320 = vpack.c.b16 %v275, %v274
  %v321 = vpack.c.b16 %v277, %v276
  %v322 = vpack.c.b16 %v279, %v278
  %v323 = vpack.c.b16 %v281, %v280
  %v324 = vpack.c.b16 %v283, %v282
  %v325 = vpack.c.b16 %v285, %v284
  %v326 = vpack.c.b16 %v287, %v286
  %v327 = vpack.c.b16 %v289, %v288
  %v328 = vpack.c.b16 %v291, %v290
  %v329 = vpack.c.b16 %v293, %v292
  %v330 = vpack.c.b16 %v295, %v294
  %v331 = vpack.c.b16 %v297, %v296
  %v332 = vpack.c.b16 %v299, %v298
  %v333 = vpack.c.b16 %v301, %v300
  %v334 = vpack.c.b16 %v303, %v302
  %v335 = vpack.c.b16 %v305, %v304
  %v336 = vpack.c.b16 %v307, %v306
  %v337 = vpack.c.b16 %v309, %v308
  %v338 = vpack.c.b16 %v311, %v310
  %v339 = vpack.c.b16 %v313, %v312
  %v340 = vpack.c.b16 %v315, %v314
  %v341 = vpack.c.b16 %v317, %v316
  %366 = vmatprep.subr.bf16.mxu0 0
  %367 = vmatpush1.bf16.msra.mxu0 %v318
  %368 = vmatprep.subr.bf16.mxu0 0
  %369 = vmatpush1.bf16.msra.mxu0 %v319
  %370 = vmatprep.subr.bf16.mxu0 0
  %371 = vmatpush1.bf16.msra.mxu0 %v320
  %372 = vmatprep.subr.bf16.mxu0 0
  %373 = vmatpush1.bf16.msra.mxu0 %v321
  %374 = vmatprep.subr.bf16.mxu0 0
  %375 = vmatpush1.bf16.msra.mxu0 %v322
  %376 = vmatprep.subr.bf16.mxu0 0
  %377 = vmatpush1.bf16.msra.mxu0 %v323
  %378 = vmatprep.subr.bf16.mxu0 0
  %379 = vmatpush1.bf16.msra.mxu0 %v324
  %380 = vmatprep.subr.bf16.mxu0 0
  %381 = vmatpush1.bf16.msra.mxu0 %v325
  %382 = vmatprep.subr.bf16.mxu0 0
  %383 = vmatpush1.bf16.msra.mxu0 %v326
  %384 = vmatprep.subr.bf16.mxu0 0
  %385 = vmatpush1.bf16.msra.mxu0 %v327
  %386 = vmatprep.subr.bf16.mxu0 0
  %387 = vmatpush1.bf16.msra.mxu0 %v328
  %388 = vmatprep.subr.bf16.mxu0 0
  %389 = vmatpush1.bf16.msra.mxu0 %v329
  %390 = vmatprep.subr.bf16.mxu0 0
  %391 = vmatpush1.bf16.msra.mxu0 %v330
  %392 = vmatprep.subr.bf16.mxu0 0
  %393 = vmatpush1.bf16.msra.mxu0 %v331
  %394 = vmatprep.subr.bf16.mxu0 0
  %395 = vmatpush1.bf16.msra.mxu0 %v332
  %396 = vmatprep.subr.bf16.mxu0 0
  %397 = vmatpush1.bf16.msra.mxu0 %v333
  %398 = vmatprep.mubr.bf16.mxu0 %v205
  %399 = vmatmul.mubr.bf16.gmra.mrb[0].mxu0 %v204
  %v400 = vpop.f32.mrb[0].mxu0
  %v401 = vadd.f32 0.0, %v400
  %v402 = vpop.f32.mrb[0].mxu0
  %v403 = vpop.f32.mrb[0].mxu0
  %v404 = vadd.f32 0.0, %v403
  %v405 = vpop.f32.mrb[0].mxu0
  %406 = vmatprep.mubr.bf16.mxu0 %v208
  %407 = vmatmul.mubr.bf16.gmra.mrb[0].mxu0 %v207
  %v408 = vpop.f32.mrb[0].mxu0
  %v409 = vadd.f32 0.0, %v408
  %v410 = vpop.f32.mrb[0].mxu0
  %v411 = vpop.f32.mrb[0].mxu0
  %v412 = vadd.f32 0.0, %v411
  %v413 = vpop.f32.mrb[0].mxu0
  %414 = vmatprep.mubr.bf16.mxu0 %v211
  %415 = vmatmul.mubr.bf16.gmra.mrb[0].mxu0 %v210
  %v416 = vpop.f32.mrb[0].mxu0
  %v417 = vadd.f32 0.0, %v416
  %v418 = vpop.f32.mrb[0].mxu0
  %v419 = vpop.f32.mrb[0].mxu0
  %v420 = vpop.f32.mrb[0].mxu0
  %421 = vdwg.mxu0
  %422 = vmatprep.subr.bf16.mxu0 0
  %423 = vmatpush1.bf16.msra.mxu0 %v334
  %424 = vmatprep.subr.bf16.mxu0 0
  %425 = vmatpush1.bf16.msra.mxu0 %v335
  %426 = vmatprep.subr.bf16.mxu0 0
  %427 = vmatpush1.bf16.msra.mxu0 %v336
  %428 = vmatprep.subr.bf16.mxu0 0
  %429 = vmatpush1.bf16.msra.mxu0 %v337
  %430 = vmatprep.subr.bf16.mxu0 0
  %431 = vmatpush1.bf16.msra.mxu0 %v338
  %432 = vmatprep.subr.bf16.mxu0 0
  %433 = vmatpush1.bf16.msra.mxu0 %v339
  %434 = vmatprep.subr.bf16.mxu0 0
  %435 = vmatpush1.bf16.msra.mxu0 %v340
  %436 = vmatprep.subr.bf16.mxu0 0
  %437 = vmatpush1.bf16.msra.mxu0 %v341
  %438 = vmatprep.subr.bf16.mxu0 0
  %439 = vmatpush1.bf16.msra.mxu0 0
  %440 = vmatprep.subr.bf16.mxu0 0
  %441 = vmatpush1.bf16.msra.mxu0 0
  %442 = vmatprep.subr.bf16.mxu0 0
  %443 = vmatpush1.bf16.msra.mxu0 0
  %444 = vmatprep.subr.bf16.mxu0 0
  %445 = vmatpush1.bf16.msra.mxu0 0
  %446 = vmatprep.subr.bf16.mxu0 0
  %447 = vmatpush1.bf16.msra.mxu0 0
  %448 = vmatprep.subr.bf16.mxu0 0
  %449 = vmatpush1.bf16.msra.mxu0 0
  %450 = vmatprep.subr.bf16.mxu0 0
  %451 = vmatpush1.bf16.msra.mxu0 0
  %452 = vmatprep.subr.bf16.mxu0 0
  %453 = vmatpush1.bf16.msra.mxu0 0
  %454 = vmatprep.mubr.bf16.mxu0 0
  %455 = vmatmul.mubr.bf16.gmra.mrb[0].mxu0 %v206
  %v456 = vpop.f32.mrb[0].mxu0
  %v457 = vadd.f32 %v401, %v456
  %v458 = vpop.f32.mrb[0].mxu0
  %v459 = vpop.f32.mrb[0].mxu0
  %v460 = vadd.f32 %v404, %v459
  %v461 = vpop.f32.mrb[0].mxu0
  %462 = vmatprep.mubr.bf16.mxu0 0
  %463 = vmatmul.mubr.bf16.gmra.mrb[0].mxu0 %v209
  %v464 = vpop.f32.mrb[0].mxu0
  %v465 = vadd.f32 %v409, %v464
  %v466 = vpop.f32.mrb[0].mxu0
  %v467 = vpop.f32.mrb[0].mxu0
  %v468 = vadd.f32 %v412, %v467
  %v469 = vpop.f32.mrb[0].mxu0
  %470 = vmatprep.mubr.bf16.mxu0 0
  %471 = vmatmul.mubr.bf16.gmra.mrb[0].mxu0 %v212
  %v472 = vpop.f32.mrb[0].mxu0
  %v473 = vadd.f32 %v417, %v472
  %v474 = vpop.f32.mrb[0].mxu0
  %v475 = vpop.f32.mrb[0].mxu0
  %v476 = vpop.f32.mrb[0].mxu0
  %477 = vdwg.mxu0
  %v478 = vld [vmem:[#allocation2 + $0x1] sm:$0xff]
  %v479 = vld [vmem:[#allocation2 + $0x9] sm:$0xff]
  %v480 = vadd.f32 %v478, %v457
  %v481 = vadd.f32 %v479, %v460
  %482 = vst [vmem:[#allocation2 + $0x1] sm:$0xff] %v480
  %483 = vst [vmem:[#allocation2 + $0x9] sm:$0xff] %v481
  %484 = vst [vmem:[%s2] sm:$0xff] %v480
  %485 = vst [vmem:[%s2 + $0x8] sm:$0xff] %v481
  %v486 = vld [vmem:[#allocation2 + $0x13] sm:$0xff]
  %v487 = vld [vmem:[#allocation2 + $0x1b] sm:$0xff]
  %vm491 = vcmask 1045504
  %v492 = vrot.slane %v465, 2
  %v493 = vrot.slane %v468, 2
  %v494 = vsel %vm491, %v492, %v493
  %v495 = vrot.slane %v473, 2
  %v496 = vsel %vm491, %v493, %v495
  %v499 = vadd.f32 %v486, %v494
  %v500 = vadd.f32 %v487, %v496
  %501 = vst [vmem:[#allocation2 + $0x13] sm:$0xff] %v499
  %502 = vst [vmem:[#allocation2 + $0x1b] sm:$0xff] %v500
  %s503 = scalar_lea.vmem %s2, 16
  %504 = vst [vmem:[%s503] sm:$0xff] %v499
  %505 = vst [vmem:[%s503 + $0x8] sm:$0xff] %v500
  %s506 = scalar_lea.vmem %s1, 192
  %v507 = vld [vmem:[%s506] sm:$0xf]
  %v508 = vld [vmem:[%s506 + $0x4] sm:$0xf]
  %v509 = vld [vmem:[%s506 + $0x8] sm:$0xf]
  %v510 = vld [vmem:[%s506 + $0xc] sm:$0xf]
  %v511 = vld [vmem:[%s506 + $0x10] sm:$0xf]
  %v512 = vld [vmem:[%s506 + $0x14] sm:$0xf]
  %v513 = vld [vmem:[%s506 + $0x18] sm:$0xf]
  %v514 = vld [vmem:[%s506 + $0x1c] sm:$0xf]
  %v515 = vld [vmem:[%s506 + $0x20] sm:$0xf]
  %v516 = vld [vmem:[%s506 + $0x24] sm:$0xf]
  %v517 = vld [vmem:[%s506 + $0x28] sm:$0xf]
  %v518 = vld [vmem:[%s506 + $0x2c] sm:$0xf]
  %v519 = vld [vmem:[%s506 + $0x30] sm:$0xf]
  %v520 = vld [vmem:[%s506 + $0x34] sm:$0xf]
  %v521 = vld [vmem:[%s506 + $0x38] sm:$0xf]
  %v522 = vld [vmem:[%s506 + $0x3c] sm:$0xf]
  %v523 = vld [vmem:[%s506 + $0x40] sm:$0xf]
  %v524 = vld [vmem:[%s506 + $0x44] sm:$0xf]
  %v525 = vld [vmem:[%s506 + $0x48] sm:$0xf]
  %v526 = vld [vmem:[%s506 + $0x4c] sm:$0xf]
  %v527 = vld [vmem:[%s506 + $0x50] sm:$0xf]
  %v528 = vld [vmem:[%s506 + $0x54] sm:$0xf]
  %v529 = vld [vmem:[%s506 + $0x58] sm:$0xf]
  %v530 = vld [vmem:[%s506 + $0x5c] sm:$0xf]
  %v531 = vld [vmem:[%s506 + $0x60] sm:$0xf]
  %v532 = vld [vmem:[%s506 + $0x64] sm:$0xf]
  %v533 = vld [vmem:[%s506 + $0x68] sm:$0xf]
  %v534 = vld [vmem:[%s506 + $0x6c] sm:$0xf]
  %v535 = vld [vmem:[%s506 + $0x70] sm:$0xf]
  %v536 = vld [vmem:[%s506 + $0x74] sm:$0xf]
  %v537 = vld [vmem:[%s506 + $0x78] sm:$0xf]
  %v538 = vld [vmem:[%s506 + $0x7c] sm:$0xf]
  %v539 = vld [vmem:[%s506 + $0x80] sm:$0xf]
  %v540 = vld [vmem:[%s506 + $0x84] sm:$0xf]
  %v541 = vld [vmem:[%s506 + $0x88] sm:$0xf]
  %v542 = vld [vmem:[%s506 + $0x8c] sm:$0xf]
  %v543 = vld [vmem:[%s506 + $0x90] sm:$0xf]
  %v544 = vld [vmem:[%s506 + $0x94] sm:$0xf]
  %v545 = vld [vmem:[%s506 + $0x98] sm:$0xf]
  %v546 = vld [vmem:[%s506 + $0x9c] sm:$0xf]
  %v547 = vld [vmem:[%s506 + $0xa0] sm:$0xf]
  %v548 = vld [vmem:[%s506 + $0xa4] sm:$0xf]
  %v549 = vld [vmem:[%s506 + $0xa8] sm:$0xf]
  %v550 = vld [vmem:[%s506 + $0xac] sm:$0xf]
  %v551 = vld [vmem:[%s506 + $0xb0] sm:$0xf]
  %v552 = vld [vmem:[%s506 + $0xb4] sm:$0xf]
  %v553 = vld [vmem:[%s506 + $0xb8] sm:$0xf]
  %v554 = vld [vmem:[%s506 + $0xbc] sm:$0xf]
  %v555 = vld [vmem:[#allocation2] sm:$0xff]
  %v556 = vld [vmem:[#allocation2 + $0x8] sm:$0xff]
  %v557 = vld [vmem:[#allocation2 + $0x10] sm:$0xff]
  %v558 = vld [vmem:[#allocation2 + $0x18] sm:$0xff]
  %v559 = vld [vmem:[#allocation2 + $0x20] sm:$0x3]
  %v560 = vpack.c.bf16 %v556, %v555
  %v561 = vpack.c.bf16 %v558, %v557
  %v562 = vpack.c.bf16 %v559, %v559
  %v566 = vunpack.c.l.b16 %v560
  %v567 = vunpack.c.h.b16 %v560
  %v568 = vunpack.c.l.b16 %v561
  %v569 = vunpack.c.h.b16 %v561
  %v570 = vunpack.c.l.b16 %v562
  %v571 = vpack.c.b16 %v566, %v566
  %v572 = vpack.c.b16 %v567, %v567
  %v573 = vpack.c.b16 %v568, %v568
  %v574 = vpack.c.b16 %v569, %v569
  %v575 = vpack.c.b16 %v570, %v570
  %581 = vst [vmem:[#allocation3] sm:$0xf] %v571
  %582 = vst [vmem:[#allocation3 + $0xc] sm:$0xf] %v572
  %583 = vst [vmem:[#allocation3 + $0x18] sm:$0xf] %v573
  %584 = vst [vmem:[#allocation3 + $0x24] sm:$0xf] %v574
  %585 = vst [vmem:[#allocation3 + $0x30] sm:$0x1] %v575
  %v586 = vld [vmem:[#allocation2 + $0x1] sm:$0xff]
  %v587 = vld [vmem:[#allocation2 + $0x9] sm:$0xff]
  %v588 = vld [vmem:[#allocation2 + $0x11] sm:$0xff]
  %v589 = vld [vmem:[#allocation2 + $0x19] sm:$0xff]
  %v590 = vld [vmem:[#allocation2 + $0x21] sm:$0x3]
  %v591 = vpack.c.bf16 %v587, %v586
  %v592 = vpack.c.bf16 %v589, %v588
  %v593 = vpack.c.bf16 %v590, %v590
  %v597 = vunpack.c.l.b16 %v591
  %v598 = vunpack.c.h.b16 %v591
  %v599 = vunpack.c.l.b16 %v592
  %v600 = vunpack.c.h.b16 %v592
  %v601 = vunpack.c.l.b16 %v593
  %v602 = vpack.c.b16 %v597, %v597
  %v603 = vpack.c.b16 %v598, %v598
  %v604 = vpack.c.b16 %v599, %v599
  %v605 = vpack.c.b16 %v600, %v600
  %v606 = vpack.c.b16 %v601, %v601
  %612 = vst [vmem:[#allocation3 + $0x4] sm:$0xf] %v602
  %613 = vst [vmem:[#allocation3 + $0x10] sm:$0xf] %v603
  %614 = vst [vmem:[#allocation3 + $0x1c] sm:$0xf] %v604
  %615 = vst [vmem:[#allocation3 + $0x28] sm:$0xf] %v605
  %616 = vst [vmem:[#allocation3 + $0x34] sm:$0x1] %v606
  %v617 = vld [vmem:[#allocation2 + $0x2] sm:$0xff]
  %v618 = vld [vmem:[#allocation2 + $0xa] sm:$0xff]
  %v619 = vld [vmem:[#allocation2 + $0x12] sm:$0xff]
  %v620 = vld [vmem:[#allocation2 + $0x1a] sm:$0xff]
  %v621 = vld [vmem:[#allocation2 + $0x22] sm:$0x3]
  %v622 = vpack.c.bf16 %v618, %v617
  %v623 = vpack.c.bf16 %v620, %v619
  %v624 = vpack.c.bf16 %v621, %v621
  %v628 = vunpack.c.l.b16 %v622
  %v629 = vunpack.c.h.b16 %v622
  %v630 = vunpack.c.l.b16 %v623
  %v631 = vunpack.c.h.b16 %v623
  %v632 = vunpack.c.l.b16 %v624
  %v633 = vpack.c.b16 %v628, %v628
  %v634 = vpack.c.b16 %v629, %v629
  %v635 = vpack.c.b16 %v630, %v630
  %v636 = vpack.c.b16 %v631, %v631
  %v637 = vpack.c.b16 %v632, %v632
  %643 = vst [vmem:[#allocation3 + $0x8] sm:$0xf] %v633
  %644 = vst [vmem:[#allocation3 + $0x14] sm:$0xf] %v634
  %645 = vst [vmem:[#allocation3 + $0x20] sm:$0xf] %v635
  %646 = vst [vmem:[#allocation3 + $0x2c] sm:$0xf] %v636
  %647 = vst [vmem:[#allocation3 + $0x38] sm:$0x1] %v637
  %v648 = vld [vmem:[#allocation3] sm:$0xff]
  %v649 = vld [vmem:[#allocation3 + $0x8] sm:$0xf]
  %v650 = vld [vmem:[#allocation3 + $0xc] sm:$0xff]
  %v651 = vld [vmem:[#allocation3 + $0x14] sm:$0xf]
  %v652 = vld [vmem:[#allocation3 + $0x18] sm:$0xff]
  %v653 = vld [vmem:[#allocation3 + $0x20] sm:$0xf]
  %v654 = vld [vmem:[#allocation3 + $0x24] sm:$0xff]
  %v655 = vld [vmem:[#allocation3 + $0x2c] sm:$0xf]
  %v656 = vld [vmem:[#allocation3 + $0x30] sm:$0x11]
  %v657 = vld [vmem:[#allocation3 + $0x38] sm:$0x1]
  %v668 = vunpack.c.l.b16 %v648
  %v669 = vunpack.c.h.b16 %v648
  %v670 = vunpack.c.l.b16 %v649
  %v671 = vunpack.c.l.b16 %v650
  %v672 = vunpack.c.h.b16 %v650
  %v673 = vunpack.c.l.b16 %v651
  %v674 = vunpack.c.l.b16 %v652
  %v675 = vunpack.c.h.b16 %v652
  %v676 = vunpack.c.l.b16 %v653
  %v677 = vunpack.c.l.b16 %v654
  %v678 = vunpack.c.h.b16 %v654
  %v679 = vunpack.c.l.b16 %v655
  %v680 = vunpack.c.l.b16 %v656
  %v681 = vunpack.c.h.b16 %v656
  %v682 = vunpack.c.l.b16 %v657
  %v683 = vpack.c.b16 %v671, %v668
  %v684 = vpack.c.b16 %v672, %v669
  %v685 = vpack.c.b16 %v673, %v670
  %v686 = vpack.c.b16 %v677, %v674
  %v687 = vpack.c.b16 %v678, %v675
  %v688 = vpack.c.b16 %v679, %v676
  %v689 = vpack.c.b16 %v680, %v680
  %v690 = vpack.c.b16 %v681, %v681
  %v691 = vpack.c.b16 %v682, %v682
  %v749 = vunpack.c.l.b16 %v507
  %v750 = vunpack.c.l.b16 %v508
  %v751 = vunpack.c.l.b16 %v509
  %v752 = vunpack.c.l.b16 %v510
  %v753 = vunpack.c.l.b16 %v511
  %v754 = vunpack.c.l.b16 %v512
  %v755 = vunpack.c.l.b16 %v513
  %v756 = vunpack.c.l.b16 %v514
  %v757 = vunpack.c.l.b16 %v515
  %v758 = vunpack.c.l.b16 %v516
  %v759 = vunpack.c.l.b16 %v517
  %v760 = vunpack.c.l.b16 %v518
  %v761 = vunpack.c.l.b16 %v519
  %v762 = vunpack.c.l.b16 %v520
  %v763 = vunpack.c.l.b16 %v521
  %v764 = vunpack.c.l.b16 %v522
  %v765 = vunpack.c.l.b16 %v523
  %v766 = vunpack.c.l.b16 %v524
  %v767 = vunpack.c.l.b16 %v525
  %v768 = vunpack.c.l.b16 %v526
  %v769 = vunpack.c.l.b16 %v527
  %v770 = vunpack.c.l.b16 %v528
  %v771 = vunpack.c.l.b16 %v529
  %v772 = vunpack.c.l.b16 %v530
  %v773 = vunpack.c.l.b16 %v531
  %v774 = vunpack.c.l.b16 %v532
  %v775 = vunpack.c.l.b16 %v533
  %v776 = vunpack.c.l.b16 %v534
  %v777 = vunpack.c.l.b16 %v535
  %v778 = vunpack.c.l.b16 %v536
  %v779 = vunpack.c.l.b16 %v537
  %v780 = vunpack.c.l.b16 %v538
  %v781 = vunpack.c.l.b16 %v539
  %v782 = vunpack.c.l.b16 %v540
  %v783 = vunpack.c.l.b16 %v541
  %v784 = vunpack.c.l.b16 %v542
  %v785 = vunpack.c.l.b16 %v543
  %v786 = vunpack.c.l.b16 %v544
  %v787 = vunpack.c.l.b16 %v545
  %v788 = vunpack.c.l.b16 %v546
  %v789 = vunpack.c.l.b16 %v547
  %v790 = vunpack.c.l.b16 %v548
  %v791 = vunpack.c.l.b16 %v549
  %v792 = vunpack.c.l.b16 %v550
  %v793 = vunpack.c.l.b16 %v551
  %v794 = vunpack.c.l.b16 %v552
  %v795 = vunpack.c.l.b16 %v553
  %v796 = vunpack.c.l.b16 %v554
  %v797 = vpack.c.b16 %v750, %v749
  %v798 = vpack.c.b16 %v752, %v751
  %v799 = vpack.c.b16 %v754, %v753
  %v800 = vpack.c.b16 %v756, %v755
  %v801 = vpack.c.b16 %v758, %v757
  %v802 = vpack.c.b16 %v760, %v759
  %v803 = vpack.c.b16 %v762, %v761
  %v804 = vpack.c.b16 %v764, %v763
  %v805 = vpack.c.b16 %v766, %v765
  %v806 = vpack.c.b16 %v768, %v767
  %v807 = vpack.c.b16 %v770, %v769
  %v808 = vpack.c.b16 %v772, %v771
  %v809 = vpack.c.b16 %v774, %v773
  %v810 = vpack.c.b16 %v776, %v775
  %v811 = vpack.c.b16 %v778, %v777
  %v812 = vpack.c.b16 %v780, %v779
  %v813 = vpack.c.b16 %v782, %v781
  %v814 = vpack.c.b16 %v784, %v783
  %v815 = vpack.c.b16 %v786, %v785
  %v816 = vpack.c.b16 %v788, %v787
  %v817 = vpack.c.b16 %v790, %v789
  %v818 = vpack.c.b16 %v792, %v791
  %v819 = vpack.c.b16 %v794, %v793
  %v820 = vpack.c.b16 %v796, %v795
  %845 = vmatprep.subr.bf16.mxu0 0
  %846 = vmatpush1.bf16.msra.mxu0 %v797
  %847 = vmatprep.subr.bf16.mxu0 0
  %848 = vmatpush1.bf16.msra.mxu0 %v798
  %849 = vmatprep.subr.bf16.mxu0 0
  %850 = vmatpush1.bf16.msra.mxu0 %v799
  %851 = vmatprep.subr.bf16.mxu0 0
  %852 = vmatpush1.bf16.msra.mxu0 %v800
  %853 = vmatprep.subr.bf16.mxu0 0
  %854 = vmatpush1.bf16.msra.mxu0 %v801
  %855 = vmatprep.subr.bf16.mxu0 0
  %856 = vmatpush1.bf16.msra.mxu0 %v802
  %857 = vmatprep.subr.bf16.mxu0 0
  %858 = vmatpush1.bf16.msra.mxu0 %v803
  %859 = vmatprep.subr.bf16.mxu0 0
  %860 = vmatpush1.bf16.msra.mxu0 %v804
  %861 = vmatprep.subr.bf16.mxu0 0
  %862 = vmatpush1.bf16.msra.mxu0 %v805
  %863 = vmatprep.subr.bf16.mxu0 0
  %864 = vmatpush1.bf16.msra.mxu0 %v806
  %865 = vmatprep.subr.bf16.mxu0 0
  %866 = vmatpush1.bf16.msra.mxu0 %v807
  %867 = vmatprep.subr.bf16.mxu0 0
  %868 = vmatpush1.bf16.msra.mxu0 %v808
  %869 = vmatprep.subr.bf16.mxu0 0
  %870 = vmatpush1.bf16.msra.mxu0 %v809
  %871 = vmatprep.subr.bf16.mxu0 0
  %872 = vmatpush1.bf16.msra.mxu0 %v810
  %873 = vmatprep.subr.bf16.mxu0 0
  %874 = vmatpush1.bf16.msra.mxu0 %v811
  %875 = vmatprep.subr.bf16.mxu0 0
  %876 = vmatpush1.bf16.msra.mxu0 %v812
  %877 = vmatprep.mubr.bf16.mxu0 %v684
  %878 = vmatmul.mubr.bf16.gmra.mrb[0].mxu0 %v683
  %v879 = vpop.f32.mrb[0].mxu0
  %v880 = vadd.f32 0.0, %v879
  %v881 = vpop.f32.mrb[0].mxu0
  %v882 = vpop.f32.mrb[0].mxu0
  %v883 = vadd.f32 0.0, %v882
  %v884 = vpop.f32.mrb[0].mxu0
  %885 = vmatprep.mubr.bf16.mxu0 %v687
  %886 = vmatmul.mubr.bf16.gmra.mrb[0].mxu0 %v686
  %v887 = vpop.f32.mrb[0].mxu0
  %v888 = vadd.f32 0.0, %v887
  %v889 = vpop.f32.mrb[0].mxu0
  %v890 = vpop.f32.mrb[0].mxu0
  %v891 = vadd.f32 0.0, %v890
  %v892 = vpop.f32.mrb[0].mxu0
  %893 = vmatprep.mubr.bf16.mxu0 %v690
  %894 = vmatmul.mubr.bf16.gmra.mrb[0].mxu0 %v689
  %v895 = vpop.f32.mrb[0].mxu0
  %v896 = vadd.f32 0.0, %v895
  %v897 = vpop.f32.mrb[0].mxu0
  %v898 = vpop.f32.mrb[0].mxu0
  %v899 = vpop.f32.mrb[0].mxu0
  %900 = vdwg.mxu0
  %901 = vmatprep.subr.bf16.mxu0 0
  %902 = vmatpush1.bf16.msra.mxu0 %v813
  %903 = vmatprep.subr.bf16.mxu0 0
  %904 = vmatpush1.bf16.msra.mxu0 %v814
  %905 = vmatprep.subr.bf16.mxu0 0
  %906 = vmatpush1.bf16.msra.mxu0 %v815
  %907 = vmatprep.subr.bf16.mxu0 0
  %908 = vmatpush1.bf16.msra.mxu0 %v816
  %909 = vmatprep.subr.bf16.mxu0 0
  %910 = vmatpush1.bf16.msra.mxu0 %v817
  %911 = vmatprep.subr.bf16.mxu0 0
  %912 = vmatpush1.bf16.msra.mxu0 %v818
  %913 = vmatprep.subr.bf16.mxu0 0
  %914 = vmatpush1.bf16.msra.mxu0 %v819
  %915 = vmatprep.subr.bf16.mxu0 0
  %916 = vmatpush1.bf16.msra.mxu0 %v820
  %917 = vmatprep.subr.bf16.mxu0 0
  %918 = vmatpush1.bf16.msra.mxu0 0
  %919 = vmatprep.subr.bf16.mxu0 0
  %920 = vmatpush1.bf16.msra.mxu0 0
  %921 = vmatprep.subr.bf16.mxu0 0
  %922 = vmatpush1.bf16.msra.mxu0 0
  %923 = vmatprep.subr.bf16.mxu0 0
  %924 = vmatpush1.bf16.msra.mxu0 0
  %925 = vmatprep.subr.bf16.mxu0 0
  %926 = vmatpush1.bf16.msra.mxu0 0
  %927 = vmatprep.subr.bf16.mxu0 0
  %928 = vmatpush1.bf16.msra.mxu0 0
  %929 = vmatprep.subr.bf16.mxu0 0
  %930 = vmatpush1.bf16.msra.mxu0 0
  %931 = vmatprep.subr.bf16.mxu0 0
  %932 = vmatpush1.bf16.msra.mxu0 0
  %933 = vmatprep.mubr.bf16.mxu0 0
  %934 = vmatmul.mubr.bf16.gmra.mrb[0].mxu0 %v685
  %v935 = vpop.f32.mrb[0].mxu0
  %v936 = vadd.f32 %v880, %v935
  %v937 = vpop.f32.mrb[0].mxu0
  %v938 = vpop.f32.mrb[0].mxu0
  %v939 = vadd.f32 %v883, %v938
  %v940 = vpop.f32.mrb[0].mxu0
  %941 = vmatprep.mubr.bf16.mxu0 0
  %942 = vmatmul.mubr.bf16.gmra.mrb[0].mxu0 %v688
  %v943 = vpop.f32.mrb[0].mxu0
  %v944 = vadd.f32 %v888, %v943
  %v945 = vpop.f32.mrb[0].mxu0
  %v946 = vpop.f32.mrb[0].mxu0
  %v947 = vadd.f32 %v891, %v946
  %v948 = vpop.f32.mrb[0].mxu0
  %949 = vmatprep.mubr.bf16.mxu0 0
  %950 = vmatmul.mubr.bf16.gmra.mrb[0].mxu0 %v691
  %v951 = vpop.f32.mrb[0].mxu0
  %v952 = vadd.f32 %v896, %v951
  %v953 = vpop.f32.mrb[0].mxu0
  %v954 = vpop.f32.mrb[0].mxu0
  %v955 = vpop.f32.mrb[0].mxu0
  %956 = vdwg.mxu0
  %v957 = vld [vmem:[#allocation2 + $0x1] sm:$0xff]
  %v958 = vld [vmem:[#allocation2 + $0x9] sm:$0xff]
  %v959 = vadd.f32 %v957, %v936
  %v960 = vadd.f32 %v958, %v939
  %961 = vst [vmem:[#allocation2 + $0x1] sm:$0xff] %v959
  %962 = vst [vmem:[#allocation2 + $0x9] sm:$0xff] %v960
  %963 = vst [vmem:[%s3] sm:$0xff] %v959
  %964 = vst [vmem:[%s3 + $0x8] sm:$0xff] %v960
  %v965 = vld [vmem:[#allocation2 + $0x13] sm:$0xff]
  %v966 = vld [vmem:[#allocation2 + $0x1b] sm:$0xff]
  %v970 = vrot.slane %v944, 2
  %v971 = vrot.slane %v947, 2
  %v972 = vsel %vm491, %v970, %v971
  %v973 = vrot.slane %v952, 2
  %v974 = vsel %vm491, %v971, %v973
  %v977 = vadd.f32 %v965, %v972
  %v978 = vadd.f32 %v966, %v974
  %979 = vst [vmem:[#allocation2 + $0x13] sm:$0xff] %v977
  %980 = vst [vmem:[#allocation2 + $0x1b] sm:$0xff] %v978
  %s981 = scalar_lea.vmem %s3, 16
  %982 = vst [vmem:[%s981] sm:$0xff] %v977
  %983 = vst [vmem:[%s981 + $0x8] sm:$0xff] %v978
  %s984 = scalar_lea.vmem %s1, 384
  %v985 = vld [vmem:[%s984] sm:$0xf]
  %v986 = vld [vmem:[%s984 + $0x4] sm:$0xf]
  %v987 = vld [vmem:[%s984 + $0x8] sm:$0xf]
  %v988 = vld [vmem:[%s984 + $0xc] sm:$0xf]
  %v989 = vld [vmem:[%s984 + $0x10] sm:$0xf]
  %v990 = vld [vmem:[%s984 + $0x14] sm:$0xf]
  %v991 = vld [vmem:[%s984 + $0x18] sm:$0xf]
  %v992 = vld [vmem:[%s984 + $0x1c] sm:$0xf]
  %v993 = vld [vmem:[%s984 + $0x20] sm:$0xf]
  %v994 = vld [vmem:[%s984 + $0x24] sm:$0xf]
  %v995 = vld [vmem:[%s984 + $0x28] sm:$0xf]
  %v996 = vld [vmem:[%s984 + $0x2c] sm:$0xf]
  %v997 = vld [vmem:[%s984 + $0x30] sm:$0xf]
  %v998 = vld [vmem:[%s984 + $0x34] sm:$0xf]
  %v999 = vld [vmem:[%s984 + $0x38] sm:$0xf]
  %v1000 = vld [vmem:[%s984 + $0x3c] sm:$0xf]
  %v1001 = vld [vmem:[%s984 + $0x40] sm:$0xf]
  %v1002 = vld [vmem:[%s984 + $0x44] sm:$0xf]
  %v1003 = vld [vmem:[%s984 + $0x48] sm:$0xf]
  %v1004 = vld [vmem:[%s984 + $0x4c] sm:$0xf]
  %v1005 = vld [vmem:[%s984 + $0x50] sm:$0xf]
  %v1006 = vld [vmem:[%s984 + $0x54] sm:$0xf]
  %v1007 = vld [vmem:[%s984 + $0x58] sm:$0xf]
  %v1008 = vld [vmem:[%s984 + $0x5c] sm:$0xf]
  %v1009 = vld [vmem:[%s984 + $0x60] sm:$0xf]
  %v1010 = vld [vmem:[%s984 + $0x64] sm:$0xf]
  %v1011 = vld [vmem:[%s984 + $0x68] sm:$0xf]
  %v1012 = vld [vmem:[%s984 + $0x6c] sm:$0xf]
  %v1013 = vld [vmem:[%s984 + $0x70] sm:$0xf]
  %v1014 = vld [vmem:[%s984 + $0x74] sm:$0xf]
  %v1015 = vld [vmem:[%s984 + $0x78] sm:$0xf]
  %v1016 = vld [vmem:[%s984 + $0x7c] sm:$0xf]
  %v1017 = vld [vmem:[%s984 + $0x80] sm:$0xf]
  %v1018 = vld [vmem:[%s984 + $0x84] sm:$0xf]
  %v1019 = vld [vmem:[%s984 + $0x88] sm:$0xf]
  %v1020 = vld [vmem:[%s984 + $0x8c] sm:$0xf]
  %v1021 = vld [vmem:[%s984 + $0x90] sm:$0xf]
  %v1022 = vld [vmem:[%s984 + $0x94] sm:$0xf]
  %v1023 = vld [vmem:[%s984 + $0x98] sm:$0xf]
  %v1024 = vld [vmem:[%s984 + $0x9c] sm:$0xf]
  %v1025 = vld [vmem:[%s984 + $0xa0] sm:$0xf]
  %v1026 = vld [vmem:[%s984 + $0xa4] sm:$0xf]
  %v1027 = vld [vmem:[%s984 + $0xa8] sm:$0xf]
  %v1028 = vld [vmem:[%s984 + $0xac] sm:$0xf]
  %v1029 = vld [vmem:[%s984 + $0xb0] sm:$0xf]
  %v1030 = vld [vmem:[%s984 + $0xb4] sm:$0xf]
  %v1031 = vld [vmem:[%s984 + $0xb8] sm:$0xf]
  %v1032 = vld [vmem:[%s984 + $0xbc] sm:$0xf]
  %v1033 = vld [vmem:[#allocation2] sm:$0xff]
  %v1034 = vld [vmem:[#allocation2 + $0x8] sm:$0xff]
  %v1035 = vld [vmem:[#allocation2 + $0x10] sm:$0xff]
  %v1036 = vld [vmem:[#allocation2 + $0x18] sm:$0xff]
  %v1037 = vld [vmem:[#allocation2 + $0x20] sm:$0x3]
  %v1038 = vpack.c.bf16 %v1034, %v1033
  %v1039 = vpack.c.bf16 %v1036, %v1035
  %v1040 = vpack.c.bf16 %v1037, %v1037
  %v1044 = vunpack.c.l.b16 %v1038
  %v1045 = vunpack.c.h.b16 %v1038
  %v1046 = vunpack.c.l.b16 %v1039
  %v1047 = vunpack.c.h.b16 %v1039
  %v1048 = vunpack.c.l.b16 %v1040
  %v1049 = vpack.c.b16 %v1044, %v1044
  %v1050 = vpack.c.b16 %v1045, %v1045
  %v1051 = vpack.c.b16 %v1046, %v1046
  %v1052 = vpack.c.b16 %v1047, %v1047
  %v1053 = vpack.c.b16 %v1048, %v1048
  %1059 = vst [vmem:[#allocation3] sm:$0xf] %v1049
  %1060 = vst [vmem:[#allocation3 + $0xc] sm:$0xf] %v1050
  %1061 = vst [vmem:[#allocation3 + $0x18] sm:$0xf] %v1051
  %1062 = vst [vmem:[#allocation3 + $0x24] sm:$0xf] %v1052
  %1063 = vst [vmem:[#allocation3 + $0x30] sm:$0x1] %v1053
  %v1064 = vld [vmem:[#allocation2 + $0x1] sm:$0xff]
  %v1065 = vld [vmem:[#allocation2 + $0x9] sm:$0xff]
  %v1066 = vld [vmem:[#allocation2 + $0x11] sm:$0xff]
  %v1067 = vld [vmem:[#allocation2 + $0x19] sm:$0xff]
  %v1068 = vld [vmem:[#allocation2 + $0x21] sm:$0x3]
  %v1069 = vpack.c.bf16 %v1065, %v1064
  %v1070 = vpack.c.bf16 %v1067, %v1066
  %v1071 = vpack.c.bf16 %v1068, %v1068
  %v1075 = vunpack.c.l.b16 %v1069
  %v1076 = vunpack.c.h.b16 %v1069
  %v1077 = vunpack.c.l.b16 %v1070
  %v1078 = vunpack.c.h.b16 %v1070
  %v1079 = vunpack.c.l.b16 %v1071
  %v1080 = vpack.c.b16 %v1075, %v1075
  %v1081 = vpack.c.b16 %v1076, %v1076
  %v1082 = vpack.c.b16 %v1077, %v1077
  %v1083 = vpack.c.b16 %v1078, %v1078
  %v1084 = vpack.c.b16 %v1079, %v1079
  %1090 = vst [vmem:[#allocation3 + $0x4] sm:$0xf] %v1080
  %1091 = vst [vmem:[#allocation3 + $0x10] sm:$0xf] %v1081
  %1092 = vst [vmem:[#allocation3 + $0x1c] sm:$0xf] %v1082
  %1093 = vst [vmem:[#allocation3 + $0x28] sm:$0xf] %v1083
  %1094 = vst [vmem:[#allocation3 + $0x34] sm:$0x1] %v1084
  %v1095 = vld [vmem:[#allocation2 + $0x2] sm:$0xff]
  %v1096 = vld [vmem:[#allocation2 + $0xa] sm:$0xff]
  %v1097 = vld [vmem:[#allocation2 + $0x12] sm:$0xff]
  %v1098 = vld [vmem:[#allocation2 + $0x1a] sm:$0xff]
  %v1099 = vld [vmem:[#allocation2 + $0x22] sm:$0x3]
  %v1100 = vpack.c.bf16 %v1096, %v1095
  %v1101 = vpack.c.bf16 %v1098, %v1097
  %v1102 = vpack.c.bf16 %v1099, %v1099
  %v1106 = vunpack.c.l.b16 %v1100
  %v1107 = vunpack.c.h.b16 %v1100
  %v1108 = vunpack.c.l.b16 %v1101
  %v1109 = vunpack.c.h.b16 %v1101
  %v1110 = vunpack.c.l.b16 %v1102
  %v1111 = vpack.c.b16 %v1106, %v1106
  %v1112 = vpack.c.b16 %v1107, %v1107
  %v1113 = vpack.c.b16 %v1108, %v1108
  %v1114 = vpack.c.b16 %v1109, %v1109
  %v1115 = vpack.c.b16 %v1110, %v1110
  %1121 = vst [vmem:[#allocation3 + $0x8] sm:$0xf] %v1111
  %1122 = vst [vmem:[#allocation3 + $0x14] sm:$0xf] %v1112
  %1123 = vst [vmem:[#allocation3 + $0x20] sm:$0xf] %v1113
  %1124 = vst [vmem:[#allocation3 + $0x2c] sm:$0xf] %v1114
  %1125 = vst [vmem:[#allocation3 + $0x38] sm:$0x1] %v1115
  %v1126 = vld [vmem:[#allocation3] sm:$0xff]
  %v1127 = vld [vmem:[#allocation3 + $0x8] sm:$0xf]
  %v1128 = vld [vmem:[#allocation3 + $0xc] sm:$0xff]
  %v1129 = vld [vmem:[#allocation3 + $0x14] sm:$0xf]
  %v1130 = vld [vmem:[#allocation3 + $0x18] sm:$0xff]
  %v1131 = vld [vmem:[#allocation3 + $0x20] sm:$0xf]
  %v1132 = vld [vmem:[#allocation3 + $0x24] sm:$0xff]
  %v1133 = vld [vmem:[#allocation3 + $0x2c] sm:$0xf]
  %v1134 = vld [vmem:[#allocation3 + $0x30] sm:$0x11]
  %v1135 = vld [vmem:[#allocation3 + $0x38] sm:$0x1]
  %v1146 = vunpack.c.l.b16 %v1126
  %v1147 = vunpack.c.h.b16 %v1126
  %v1148 = vunpack.c.l.b16 %v1127
  %v1149 = vunpack.c.l.b16 %v1128
  %v1150 = vunpack.c.h.b16 %v1128
  %v1151 = vunpack.c.l.b16 %v1129
  %v1152 = vunpack.c.l.b16 %v1130
  %v1153 = vunpack.c.h.b16 %v1130
  %v1154 = vunpack.c.l.b16 %v1131
  %v1155 = vunpack.c.l.b16 %v1132
  %v1156 = vunpack.c.h.b16 %v1132
  %v1157 = vunpack.c.l.b16 %v1133
  %v1158 = vunpack.c.l.b16 %v1134
  %v1159 = vunpack.c.h.b16 %v1134
  %v1160 = vunpack.c.l.b16 %v1135
  %v1161 = vpack.c.b16 %v1149, %v1146
  %v1162 = vpack.c.b16 %v1150, %v1147
  %v1163 = vpack.c.b16 %v1151, %v1148
  %v1164 = vpack.c.b16 %v1155, %v1152
  %v1165 = vpack.c.b16 %v1156, %v1153
  %v1166 = vpack.c.b16 %v1157, %v1154
  %v1167 = vpack.c.b16 %v1158, %v1158
  %v1168 = vpack.c.b16 %v1159, %v1159
  %v1169 = vpack.c.b16 %v1160, %v1160
  %v1227 = vunpack.c.l.b16 %v985
  %v1228 = vunpack.c.l.b16 %v986
  %v1229 = vunpack.c.l.b16 %v987
  %v1230 = vunpack.c.l.b16 %v988
  %v1231 = vunpack.c.l.b16 %v989
  %v1232 = vunpack.c.l.b16 %v990
  %v1233 = vunpack.c.l.b16 %v991
  %v1234 = vunpack.c.l.b16 %v992
  %v1235 = vunpack.c.l.b16 %v993
  %v1236 = vunpack.c.l.b16 %v994
  %v1237 = vunpack.c.l.b16 %v995
  %v1238 = vunpack.c.l.b16 %v996
  %v1239 = vunpack.c.l.b16 %v997
  %v1240 = vunpack.c.l.b16 %v998
  %v1241 = vunpack.c.l.b16 %v999
  %v1242 = vunpack.c.l.b16 %v1000
  %v1243 = vunpack.c.l.b16 %v1001
  %v1244 = vunpack.c.l.b16 %v1002
  %v1245 = vunpack.c.l.b16 %v1003
  %v1246 = vunpack.c.l.b16 %v1004
  %v1247 = vunpack.c.l.b16 %v1005
  %v1248 = vunpack.c.l.b16 %v1006
  %v1249 = vunpack.c.l.b16 %v1007
  %v1250 = vunpack.c.l.b16 %v1008
  %v1251 = vunpack.c.l.b16 %v1009
  %v1252 = vunpack.c.l.b16 %v1010
  %v1253 = vunpack.c.l.b16 %v1011
  %v1254 = vunpack.c.l.b16 %v1012
  %v1255 = vunpack.c.l.b16 %v1013
  %v1256 = vunpack.c.l.b16 %v1014
  %v1257 = vunpack.c.l.b16 %v1015
  %v1258 = vunpack.c.l.b16 %v1016
  %v1259 = vunpack.c.l.b16 %v1017
  %v1260 = vunpack.c.l.b16 %v1018
  %v1261 = vunpack.c.l.b16 %v1019
  %v1262 = vunpack.c.l.b16 %v1020
  %v1263 = vunpack.c.l.b16 %v1021
  %v1264 = vunpack.c.l.b16 %v1022
  %v1265 = vunpack.c.l.b16 %v1023
  %v1266 = vunpack.c.l.b16 %v1024
  %v1267 = vunpack.c.l.b16 %v1025
  %v1268 = vunpack.c.l.b16 %v1026
  %v1269 = vunpack.c.l.b16 %v1027
  %v1270 = vunpack.c.l.b16 %v1028
  %v1271 = vunpack.c.l.b16 %v1029
  %v1272 = vunpack.c.l.b16 %v1030
  %v1273 = vunpack.c.l.b16 %v1031
  %v1274 = vunpack.c.l.b16 %v1032
  %v1275 = vpack.c.b16 %v1228, %v1227
  %v1276 = vpack.c.b16 %v1230, %v1229
  %v1277 = vpack.c.b16 %v1232, %v1231
  %v1278 = vpack.c.b16 %v1234, %v1233
  %v1279 = vpack.c.b16 %v1236, %v1235
  %v1280 = vpack.c.b16 %v1238, %v1237
  %v1281 = vpack.c.b16 %v1240, %v1239
  %v1282 = vpack.c.b16 %v1242, %v1241
  %v1283 = vpack.c.b16 %v1244, %v1243
  %v1284 = vpack.c.b16 %v1246, %v1245
  %v1285 = vpack.c.b16 %v1248, %v1247
  %v1286 = vpack.c.b16 %v1250, %v1249
  %v1287 = vpack.c.b16 %v1252, %v1251
  %v1288 = vpack.c.b16 %v1254, %v1253
  %v1289 = vpack.c.b16 %v1256, %v1255
  %v1290 = vpack.c.b16 %v1258, %v1257
  %v1291 = vpack.c.b16 %v1260, %v1259
  %v1292 = vpack.c.b16 %v1262, %v1261
  %v1293 = vpack.c.b16 %v1264, %v1263
  %v1294 = vpack.c.b16 %v1266, %v1265
  %v1295 = vpack.c.b16 %v1268, %v1267
  %v1296 = vpack.c.b16 %v1270, %v1269
  %v1297 = vpack.c.b16 %v1272, %v1271
  %v1298 = vpack.c.b16 %v1274, %v1273
  %1323 = vmatprep.subr.bf16.mxu0 0
  %1324 = vmatpush1.bf16.msra.mxu0 %v1275
  %1325 = vmatprep.subr.bf16.mxu0 0
  %1326 = vmatpush1.bf16.msra.mxu0 %v1276
  %1327 = vmatprep.subr.bf16.mxu0 0
  %1328 = vmatpush1.bf16.msra.mxu0 %v1277
  %1329 = vmatprep.subr.bf16.mxu0 0
  %1330 = vmatpush1.bf16.msra.mxu0 %v1278
  %1331 = vmatprep.subr.bf16.mxu0 0
  %1332 = vmatpush1.bf16.msra.mxu0 %v1279
  %1333 = vmatprep.subr.bf16.mxu0 0
  %1334 = vmatpush1.bf16.msra.mxu0 %v1280
  %1335 = vmatprep.subr.bf16.mxu0 0
  %1336 = vmatpush1.bf16.msra.mxu0 %v1281
  %1337 = vmatprep.subr.bf16.mxu0 0
  %1338 = vmatpush1.bf16.msra.mxu0 %v1282
  %1339 = vmatprep.subr.bf16.mxu0 0
  %1340 = vmatpush1.bf16.msra.mxu0 %v1283
  %1341 = vmatprep.subr.bf16.mxu0 0
  %1342 = vmatpush1.bf16.msra.mxu0 %v1284
  %1343 = vmatprep.subr.bf16.mxu0 0
  %1344 = vmatpush1.bf16.msra.mxu0 %v1285
  %1345 = vmatprep.subr.bf16.mxu0 0
  %1346 = vmatpush1.bf16.msra.mxu0 %v1286
  %1347 = vmatprep.subr.bf16.mxu0 0
  %1348 = vmatpush1.bf16.msra.mxu0 %v1287
  %1349 = vmatprep.subr.bf16.mxu0 0
  %1350 = vmatpush1.bf16.msra.mxu0 %v1288
  %1351 = vmatprep.subr.bf16.mxu0 0
  %1352 = vmatpush1.bf16.msra.mxu0 %v1289
  %1353 = vmatprep.subr.bf16.mxu0 0
  %1354 = vmatpush1.bf16.msra.mxu0 %v1290
  %1355 = vmatprep.mubr.bf16.mxu0 %v1162
  %1356 = vmatmul.mubr.bf16.gmra.mrb[0].mxu0 %v1161
  %v1357 = vpop.f32.mrb[0].mxu0
  %v1358 = vadd.f32 0.0, %v1357
  %v1359 = vpop.f32.mrb[0].mxu0
  %v1360 = vpop.f32.mrb[0].mxu0
  %v1361 = vadd.f32 0.0, %v1360
  %v1362 = vpop.f32.mrb[0].mxu0
  %1363 = vmatprep.mubr.bf16.mxu0 %v1165
  %1364 = vmatmul.mubr.bf16.gmra.mrb[0].mxu0 %v1164
  %v1365 = vpop.f32.mrb[0].mxu0
  %v1366 = vadd.f32 0.0, %v1365
  %v1367 = vpop.f32.mrb[0].mxu0
  %v1368 = vpop.f32.mrb[0].mxu0
  %v1369 = vadd.f32 0.0, %v1368
  %v1370 = vpop.f32.mrb[0].mxu0
  %1371 = vmatprep.mubr.bf16.mxu0 %v1168
  %1372 = vmatmul.mubr.bf16.gmra.mrb[0].mxu0 %v1167
  %v1373 = vpop.f32.mrb[0].mxu0
  %v1374 = vadd.f32 0.0, %v1373
  %v1375 = vpop.f32.mrb[0].mxu0
  %v1376 = vpop.f32.mrb[0].mxu0
  %v1377 = vpop.f32.mrb[0].mxu0
  %1378 = vdwg.mxu0
  %1379 = vmatprep.subr.bf16.mxu0 0
  %1380 = vmatpush1.bf16.msra.mxu0 %v1291
  %1381 = vmatprep.subr.bf16.mxu0 0
  %1382 = vmatpush1.bf16.msra.mxu0 %v1292
  %1383 = vmatprep.subr.bf16.mxu0 0
  %1384 = vmatpush1.bf16.msra.mxu0 %v1293
  %1385 = vmatprep.subr.bf16.mxu0 0
  %1386 = vmatpush1.bf16.msra.mxu0 %v1294
  %1387 = vmatprep.subr.bf16.mxu0 0
  %1388 = vmatpush1.bf16.msra.mxu0 %v1295
  %1389 = vmatprep.subr.bf16.mxu0 0
  %1390 = vmatpush1.bf16.msra.mxu0 %v1296
  %1391 = vmatprep.subr.bf16.mxu0 0
  %1392 = vmatpush1.bf16.msra.mxu0 %v1297
  %1393 = vmatprep.subr.bf16.mxu0 0
  %1394 = vmatpush1.bf16.msra.mxu0 %v1298
  %1395 = vmatprep.subr.bf16.mxu0 0
  %1396 = vmatpush1.bf16.msra.mxu0 0
  %1397 = vmatprep.subr.bf16.mxu0 0
  %1398 = vmatpush1.bf16.msra.mxu0 0
  %1399 = vmatprep.subr.bf16.mxu0 0
  %1400 = vmatpush1.bf16.msra.mxu0 0
  %1401 = vmatprep.subr.bf16.mxu0 0
  %1402 = vmatpush1.bf16.msra.mxu0 0
  %1403 = vmatprep.subr.bf16.mxu0 0
  %1404 = vmatpush1.bf16.msra.mxu0 0
  %1405 = vmatprep.subr.bf16.mxu0 0
  %1406 = vmatpush1.bf16.msra.mxu0 0
  %1407 = vmatprep.subr.bf16.mxu0 0
  %1408 = vmatpush1.bf16.msra.mxu0 0
  %1409 = vmatprep.subr.bf16.mxu0 0
  %1410 = vmatpush1.bf16.msra.mxu0 0
  %1411 = vmatprep.mubr.bf16.mxu0 0
  %1412 = vmatmul.mubr.bf16.gmra.mrb[0].mxu0 %v1163
  %v1413 = vpop.f32.mrb[0].mxu0
  %v1414 = vadd.f32 %v1358, %v1413
  %v1415 = vpop.f32.mrb[0].mxu0
  %v1416 = vpop.f32.mrb[0].mxu0
  %v1417 = vadd.f32 %v1361, %v1416
  %v1418 = vpop.f32.mrb[0].mxu0
  %1419 = vmatprep.mubr.bf16.mxu0 0
  %1420 = vmatmul.mubr.bf16.gmra.mrb[0].mxu0 %v1166
  %v1421 = vpop.f32.mrb[0].mxu0
  %v1422 = vadd.f32 %v1366, %v1421
  %v1423 = vpop.f32.mrb[0].mxu0
  %v1424 = vpop.f32.mrb[0].mxu0
  %v1425 = vadd.f32 %v1369, %v1424
  %v1426 = vpop.f32.mrb[0].mxu0
  %1427 = vmatprep.mubr.bf16.mxu0 0
  %1428 = vmatmul.mubr.bf16.gmra.mrb[0].mxu0 %v1169
  %v1429 = vpop.f32.mrb[0].mxu0
  %v1430 = vadd.f32 %v1374, %v1429
  %v1431 = vpop.f32.mrb[0].mxu0
  %v1432 = vpop.f32.mrb[0].mxu0
  %v1433 = vpop.f32.mrb[0].mxu0
  %1434 = vdwg.mxu0
  %v1435 = vld [vmem:[#allocation2 + $0x1] sm:$0xff]
  %v1436 = vld [vmem:[#allocation2 + $0x9] sm:$0xff]
  %v1437 = vadd.f32 %v1435, %v1414
  %v1438 = vadd.f32 %v1436, %v1417
  %1439 = vst [vmem:[#allocation2 + $0x1] sm:$0xff] %v1437
  %1440 = vst [vmem:[#allocation2 + $0x9] sm:$0xff] %v1438
  %1441 = vst [vmem:[%s4] sm:$0xff] %v1437
  %1442 = vst [vmem:[%s4 + $0x8] sm:$0xff] %v1438
  %v1443 = vld [vmem:[#allocation2 + $0x13] sm:$0xff]
  %v1444 = vld [vmem:[#allocation2 + $0x1b] sm:$0xff]
  %v1448 = vrot.slane %v1422, 2
  %v1449 = vrot.slane %v1425, 2
  %v1450 = vsel %vm491, %v1448, %v1449
  %v1451 = vrot.slane %v1430, 2
  %v1452 = vsel %vm491, %v1449, %v1451
  %v1455 = vadd.f32 %v1443, %v1450
  %v1456 = vadd.f32 %v1444, %v1452
  %1457 = vst [vmem:[#allocation2 + $0x13] sm:$0xff] %v1455
  %1458 = vst [vmem:[#allocation2 + $0x1b] sm:$0xff] %v1456
  %s1459 = scalar_lea.vmem %s4, 16
  %1460 = vst [vmem:[%s1459] sm:$0xff] %v1455
  %1461 = vst [vmem:[%s1459 + $0x8] sm:$0xff] %v1456
  // Predicated region
  $region10: #{orsnet2_forward.1} parent=0 // pred_check
    _
  $region11: #{orsnet2_forward.1} parent=0 // pred_check_branch
    %1463 = sbr.rel (0) target = $region13
  $region12: #{orsnet2_forward.1} parent=0 // pred_region
    _
  $region13: #{orsnet2_forward.1} parent=0 // pred_fallthru
    _
  // Predicated region
  $region14: #{orsnet2_forward.1} parent=0 // pred_check
    _
  $region15: #{orsnet2_forward.1} parent=0 // pred_check_branch
    %1465 = sbr.rel (0) target = $region17
  $region16: #{orsnet2_forward.1} parent=0 // pred_region
    _
  $region17: #{orsnet2_forward.1} parent=0 // pred_fallthru
    _
  // Predicated region
  $region18: #{orsnet2_forward.1} parent=0 // pred_check
    _
  $region19: #{orsnet2_forward.1} parent=0 // pred_check_branch
    %1467 = sbr.rel (0) target = $region21
  $region20: #{orsnet2_forward.1} parent=0 // pred_region
    _
  $region21: #{orsnet2_forward.1} parent=0 // pred_fallthru
    _
  // Predicated region
  $region22: #{orsnet2_forward.1} parent=0 // pred_check
    _
  $region23: #{orsnet2_forward.1} parent=0 // pred_check_branch
    %1469 = sbr.rel (0) target = $region25
  $region24: #{orsnet2_forward.1} parent=0 // pred_region
    _
  $region25: #{orsnet2_forward.1} parent=0 // pred_fallthru
    _
  // Predicated region
  $region26: #{orsnet2_forward.1} parent=0 // pred_check
    _
  $region27: #{orsnet2_forward.1} parent=0 // pred_check_branch
    %1471 = sbr.rel (0) target = $region29
  $region28: #{orsnet2_forward.1} parent=0 // pred_region
    _
  $region29: #{orsnet2_forward.1} parent=0 // pred_fallthru
    _
  // Predicated region
  $region30: #{orsnet2_forward.1} parent=0 // pred_check
    _
  $region31: #{orsnet2_forward.1} parent=0 // pred_check_branch
    %1473 = sbr.rel (0) target = $region33
  $region32: #{orsnet2_forward.1} parent=0 // pred_region
    _
  $region33: #{orsnet2_forward.1} parent=0 // pred_fallthru
    _

</llo_original>
